<compile_context>
chip_gen: v7x
topology: tpu7x:2x2x1
jax: 0.10.0
libtpu: 0.0.40
codegen_flags: <defaults>
</compile_context>

<pallas_src>
import functools

import jax
import jax.numpy as jnp
from jax.experimental import pallas as pl
from jax.experimental.pallas import tpu as pltpu


# ----------------------------------------------------------------------------
# Wrapper-side weight transforms (tiny, trace-time only)
# ----------------------------------------------------------------------------
def _deconv_as_phase_conv(w_pt):
    """ConvTranspose2d(k=4,s=2,p=1) weight (Cin,Cu,4,4) -> phase-space conv3x3.

    Returns (9*Cin, 4*Cu): a 3x3/pad=1 conv of x whose output channel block
    p = dy*2+dx holds up[2r+dy, 2c+dx, :].  Derivation: up[2r+dy] gets
    contributions x[r+ky3-1] * w[..., 3+dy-2*ky3] when that index is in [0,3].
    """
    Cin, Cu = w_pt.shape[0], w_pt.shape[1]
    w = jnp.zeros((3, 3, Cin, 4 * Cu), w_pt.dtype)
    for ky in range(3):
        for kx in range(3):
            for dy in range(2):
                for dx in range(2):
                    KY = 3 + dy - 2 * ky
                    KX = 3 + dx - 2 * kx
                    if 0 <= KY < 4 and 0 <= KX < 4:
                        p = dy * 2 + dx
                        w = w.at[ky, kx, :, p * Cu:(p + 1) * Cu].set(
                            w_pt[:, :, KY, KX])
    return w.reshape(9 * Cin, 4 * Cu)


def _conv3x3_as_phase_conv(w_oihw, ci_start, ci_n):
    """Fine-grid Conv2d(k=3,s=1,p=1) OIHW weight -> phase-space conv3x3 weight.

    Acts on phase-space input channels (dy*2+dx)*ci_n + ci (ci indexing the
    fine-grid channel range [ci_start, ci_start+ci_n)) and produces phase-space
    output channels (ey*2+ex)*Cout + co.  A 3x3 conv on the 2Hx2W grid spans at
    most a 3x3 neighborhood of the HxW phase grid; tap ty = 2*ky + dy - ey - 1.
    Returns (9*4*ci_n, 4*Cout).
    """
    Cout = w_oihw.shape[0]
    wsub = jnp.transpose(w_oihw[:, ci_start:ci_start + ci_n], (1, 0, 2, 3))
    w = jnp.zeros((3, 3, 4 * ci_n, 4 * Cout), w_oihw.dtype)
    for ky in range(3):
        for kx in range(3):
            for dy in range(2):
                for dx in range(2):
                    for ey in range(2):
                        for ex in range(2):
                            ty = 2 * ky + dy - ey - 1
                            tx = 2 * kx + dx - ex - 1
                            if 0 <= ty < 3 and 0 <= tx < 3:
                                pi = dy * 2 + dx
                                po = ey * 2 + ex
                                w = w.at[ky, kx,
                                         pi * ci_n:(pi + 1) * ci_n,
                                         po * Cout:(po + 1) * Cout].set(
                                             wsub[:, :, ty, tx])
    return w.reshape(36 * ci_n, 4 * Cout)


def _space_to_depth_nchw(x_nchw):
    """(N, C, 2H, 2W) NCHW -> phase-space NHWC (N, H, W, 4*C)."""
    N, C, H2, W2 = x_nchw.shape
    H, W = H2 // 2, W2 // 2
    x = x_nchw.reshape(N, C, H, 2, W, 2)
    x = jnp.transpose(x, (0, 2, 4, 3, 5, 1))        # (N, H, W, dy, dx, C)
    return x.reshape(N, H, W, 4 * C)


def _depth_to_space_to_nchw(y_ps_flat, H, W, Cout):
    """(N, H*W, 4*Cout) phase space -> (N, Cout, 2H, 2W) NCHW."""
    N = y_ps_flat.shape[0]
    y = y_ps_flat.reshape(N, H, W, 2, 2, Cout)       # (n, r, c, ey, ex, co)
    y = jnp.transpose(y, (0, 5, 1, 3, 2, 4))         # (n, co, r, ey, c, ex)
    return y.reshape(N, Cout, 2 * H, 2 * W)


# ----------------------------------------------------------------------------
# Fused kernel
# ----------------------------------------------------------------------------
def _im2col3x3(padded, H, W):
    """padded: (H+2, W+2, C) value -> (H*W, 9*C) patch (tap-major columns)."""
    C = padded.shape[-1]
    cols = []
    for ky in range(3):
        for kx in range(3):
            cols.append(padded[ky:ky + H, kx:kx + W, :].reshape(H * W, C))
    return jnp.concatenate(cols, axis=-1)


def _unet_up_kernel(xp_ref, sp_ref, wup_ref, bup_ref, w1u_ref, w1s_ref,
                    b1_ref, w2_ref, b2_ref, o_ref, up_pad_ref, y1_pad_ref,
                    *, H, W):
    """One batch image per grid step; all intermediates stay in VMEM.

    xp_ref : (1, H+2, W+2, Cin)       spatially pre-padded input
    sp_ref : (1, H+2, W+2, 4*Cs)      pre-padded phase-space skip
    wup    : (9*Cin,   4*Cu)          deconv as phase-space conv3x3
    w1u    : (36*Cu,   4*Cout)        conv1, up-channel part (concat-as-sum)
    w1s    : (36*Cs,   4*Cout)        conv1, skip-channel part
    w2     : (36*Cout, 4*Cout)        conv2
    o_ref  : (1, H*W, 4*Cout)         phase-space output
    """
    f32 = jnp.float32

    # --- up: ConvTranspose2d(4,2,1) as one im2col matmul (K = 9*Cin) -------
    patch_x = _im2col3x3(xp_ref[0], H, W)                       # (HW, 9*Cin)
    up = jnp.dot(patch_x, wup_ref[...], preferred_element_type=f32)
    up = up + bup_ref[0, :][None, :]                            # (HW, 4*Cu)
    up_pad_ref[...] = jnp.zeros(up_pad_ref.shape, up_pad_ref.dtype)
    up_pad_ref[1:H + 1, 1:W + 1, :] = up.reshape(H, W, up.shape[-1])

    # --- conv1 + ReLU: cat(up, skip) realized as a sum of two matmuls ------
    patch_u = _im2col3x3(up_pad_ref[...], H, W)                 # (HW, 36*Cu)
    patch_s = _im2col3x3(sp_ref[0], H, W)                       # (HW, 36*Cs)
    y1 = jnp.dot(patch_u, w1u_ref[...], preferred_element_type=f32)
    y1 = y1 + jnp.dot(patch_s, w1s_ref[...], preferred_element_type=f32)
    y1 = jnp.maximum(y1 + b1_ref[0, :][None, :], 0.0)           # (HW, 4*Cout)
    y1_pad_ref[...] = jnp.zeros(y1_pad_ref.shape, y1_pad_ref.dtype)
    y1_pad_ref[1:H + 1, 1:W + 1, :] = y1.reshape(H, W, y1.shape[-1])

    # --- conv2 + ReLU -------------------------------------------------------
    patch_y = _im2col3x3(y1_pad_ref[...], H, W)                 # (HW, 36*Cout)
    y2 = jnp.dot(patch_y, w2_ref[...], preferred_element_type=f32)
    y2 = jnp.maximum(y2 + b2_ref[0, :][None, :], 0.0)
    o_ref[0, :, :] = y2.astype(o_ref.dtype)


# ----------------------------------------------------------------------------
# Public forward (NCHW API, PyTorch-native parameter layouts)
# ----------------------------------------------------------------------------
@jax.jit
def unet_up_forward(params, inputs0_nchw, *skips_nchw):
    """UNetUp.forward(inputs0, *skips): up -> cat -> conv3x3+ReLU x2 (NCHW)."""
    N, Cin, H, W = inputs0_nchw.shape
    up_w, up_b = params["up_w"], params["up_b"]     # (Cin,Cu,4,4), (Cu,)
    c1_w, c1_b = params["c1_w"], params["c1_b"]     # OIHW (Cout,Cu+Cs,3,3)
    c2_w, c2_b = params["c2_w"], params["c2_b"]     # OIHW (Cout,Cout,3,3)
    Cu, Cout = up_w.shape[1], c1_w.shape[0]

    skip = (skips_nchw[0] if len(skips_nchw) == 1
            else jnp.concatenate(skips_nchw, axis=1))
    Cs = skip.shape[1]

    # Activations: NCHW -> NHWC (x) / phase-space NHWC (skip), pre-padded.
    x = jnp.transpose(inputs0_nchw, (0, 2, 3, 1))
    xpad = jnp.pad(x, ((0, 0), (1, 1), (1, 1), (0, 0)))
    skip_ps = _space_to_depth_nchw(skip)
    skip_pad = jnp.pad(skip_ps, ((0, 0), (1, 1), (1, 1), (0, 0)))

    # Phase-space weights (tiny; built once at trace time).
    wup = _deconv_as_phase_conv(up_w)                       # (9*Cin, 4*Cu)
    bup = jnp.tile(up_b, 4).reshape(1, 4 * Cu)
    w1u = _conv3x3_as_phase_conv(c1_w, 0, Cu)               # (36*Cu, 4*Cout)
    w1s = _conv3x3_as_phase_conv(c1_w, Cu, Cs)              # (36*Cs, 4*Cout)
    b1 = jnp.tile(c1_b, 4).reshape(1, 4 * Cout)
    w2 = _conv3x3_as_phase_conv(c2_w, 0, Cout)              # (36*Cout, 4*Cout)
    b2 = jnp.tile(c2_b, 4).reshape(1, 4 * Cout)

    kernel = functools.partial(_unet_up_kernel, H=H, W=W)
    out_ps = pl.pallas_call(
        kernel,
        out_shape=jax.ShapeDtypeStruct((N, H * W, 4 * Cout), x.dtype),
        grid=(N,),
        in_specs=[
            pl.BlockSpec((1, H + 2, W + 2, Cin), lambda n: (n, 0, 0, 0)),
            pl.BlockSpec((1, H + 2, W + 2, 4 * Cs), lambda n: (n, 0, 0, 0)),
            pl.BlockSpec((9 * Cin, 4 * Cu), lambda n: (0, 0)),
            pl.BlockSpec((1, 4 * Cu), lambda n: (0, 0)),
            pl.BlockSpec((36 * Cu, 4 * Cout), lambda n: (0, 0)),
            pl.BlockSpec((36 * Cs, 4 * Cout), lambda n: (0, 0)),
            pl.BlockSpec((1, 4 * Cout), lambda n: (0, 0)),
            pl.BlockSpec((36 * Cout, 4 * Cout), lambda n: (0, 0)),
            pl.BlockSpec((1, 4 * Cout), lambda n: (0, 0)),
        ],
        out_specs=pl.BlockSpec((1, H * W, 4 * Cout), lambda n: (n, 0, 0)),
        scratch_shapes=[
            pltpu.VMEM((H + 2, W + 2, 4 * Cu), jnp.float32),
            pltpu.VMEM((H + 2, W + 2, 4 * Cout), jnp.float32),
        ],
        compiler_params=pltpu.CompilerParams(
            dimension_semantics=("parallel",),
            vmem_limit_bytes=32 * 1024 * 1024),
    )(xpad, skip_pad, wup, bup, w1u, w1s, b1, w2, b2)

    return _depth_to_space_to_nchw(out_ps, H, W, Cout)


# ----------------------------------------------------------------------------
# Pure-JAX reference (mirrors the PyTorch module exactly, NCHW)
# ----------------------------------------------------------------------------
def _ref_forward(params, inputs0, *skips):
    dn = ("NCHW", "OIHW", "NCHW")
    w_up = jnp.transpose(params["up_w"], (1, 0, 2, 3))[:, :, ::-1, ::-1]
    up = jax.lax.conv_general_dilated(
        inputs0, w_up, window_strides=(1, 1), padding=[(2, 2), (2, 2)],
        lhs_dilation=(2, 2), dimension_numbers=dn)
    up = up + params["up_b"][None, :, None, None]
    y = jnp.concatenate([up] + list(skips), axis=1)
    for wn, bn in (("c1_w", "c1_b"), ("c2_w", "c2_b")):
        y = jax.lax.conv_general_dilated(
            y, params[wn], window_strides=(1, 1), padding=[(1, 1), (1, 1)],
            dimension_numbers=dn)
        y = jax.nn.relu(y + params[bn][None, :, None, None])
    return y


if __name__ == "__main__":
    # UNetUp(in_size=16, out_size=8, is_deconv=True), small synthetic shapes.
    in_size, out_size = 16, 8
    N, H, W = 2, 8, 8

    key = jax.random.PRNGKey(0)
    k = jax.random.split(key, 8)
    params = {
        # ConvTranspose2d(in_size, out_size, 4, 2, 1): weight (Cin, Cout, 4, 4)
        "up_w": 0.1 * jax.random.normal(k[0], (in_size, out_size, 4, 4), jnp.float32),
        "up_b": 0.1 * jax.random.normal(k[1], (out_size,), jnp.float32),
        # Conv2d(out_size*2, out_size, 3, 1, 1): OIHW
        "c1_w": 0.1 * jax.random.normal(k[2], (out_size, out_size * 2, 3, 3), jnp.float32),
        "c1_b": 0.1 * jax.random.normal(k[3], (out_size,), jnp.float32),
        # Conv2d(out_size, out_size, 3, 1, 1): OIHW
        "c2_w": 0.1 * jax.random.normal(k[4], (out_size, out_size, 3, 3), jnp.float32),
        "c2_b": 0.1 * jax.random.normal(k[5], (out_size,), jnp.float32),
    }

    inputs0 = jax.random.normal(k[6], (N, in_size, H, W), jnp.float32)
    skip = jax.random.normal(k[7], (N, out_size, 2 * H, 2 * W), jnp.float32)

    out = jax.block_until_ready(unet_up_forward(params, inputs0, skip))
    assert out.shape == (N, out_size, 2 * H, 2 * W), out.shape
    assert out.dtype == jnp.float32

    ref = _ref_forward(params, inputs0, skip)
    max_err = float(jnp.max(jnp.abs(out - ref)))
    assert jnp.allclose(out, ref, atol=5e-4, rtol=5e-4), max_err

    print("KERNEL_OK")
</pallas_src>

<mosaic_0001>
module attributes {stable_mosaic.version = 11 : i64} {
  func.func @_unet_up_kernel(%arg0: i32, %arg1: memref<1x10x10x16xf32, #tpu.memory_space<vmem>>, %arg2: memref<1x10x10x32xf32, #tpu.memory_space<vmem>>, %arg3: memref<144x32xf32, #tpu.memory_space<vmem>>, %arg4: memref<1x32xf32, #tpu.memory_space<vmem>>, %arg5: memref<288x32xf32, #tpu.memory_space<vmem>>, %arg6: memref<288x32xf32, #tpu.memory_space<vmem>>, %arg7: memref<1x32xf32, #tpu.memory_space<vmem>>, %arg8: memref<288x32xf32, #tpu.memory_space<vmem>>, %arg9: memref<1x32xf32, #tpu.memory_space<vmem>>, %arg10: memref<1x64x32xf32, #tpu.memory_space<vmem>>, %arg11: memref<10x10x32xf32, #tpu.memory_space<vmem>>, %arg12: memref<10x10x32xf32, #tpu.memory_space<vmem>>) attributes {dimension_semantics = [#tpu.dimension_semantics<parallel>], iteration_bounds = array<i64: 2>, scalar_prefetch = 0 : i64, scratch_operands = 2 : i64, tpu.core_type = #tpu.core_type<tc>, window_params = [{transform_indices = @transform_0, window_bounds = array<i64: 1, 10, 10, 16>}, {transform_indices = @transform_1, window_bounds = array<i64: 1, 10, 10, 32>}, {pipeline_mode = #tpu.pipeline_mode<synchronous>, transform_indices = @transform_2, window_bounds = array<i64: 144, 32>}, {pipeline_mode = #tpu.pipeline_mode<synchronous>, transform_indices = @transform_3, window_bounds = array<i64: 1, 32>}, {pipeline_mode = #tpu.pipeline_mode<synchronous>, transform_indices = @transform_4, window_bounds = array<i64: 288, 32>}, {pipeline_mode = #tpu.pipeline_mode<synchronous>, transform_indices = @transform_5, window_bounds = array<i64: 288, 32>}, {pipeline_mode = #tpu.pipeline_mode<synchronous>, transform_indices = @transform_6, window_bounds = array<i64: 1, 32>}, {pipeline_mode = #tpu.pipeline_mode<synchronous>, transform_indices = @transform_7, window_bounds = array<i64: 288, 32>}, {pipeline_mode = #tpu.pipeline_mode<synchronous>, transform_indices = @transform_8, window_bounds = array<i64: 1, 32>}, {transform_indices = @transform_9, window_bounds = array<i64: 1, 64, 32>}]} {
    %c0 = arith.constant 0 : index
    %c0_0 = arith.constant 0 : index
    %c0_1 = arith.constant 0 : index
    %c0_2 = arith.constant 0 : index
    %0 = vector.load %arg1[%c0, %c0_0, %c0_1, %c0_2] : memref<1x10x10x16xf32, #tpu.memory_space<vmem>>, vector<1x10x10x16xf32>
    %1 = vector.shape_cast %0 : vector<1x10x10x16xf32> to vector<10x10x16xf32>
    %2 = vector.extract_strided_slice %1 {offsets = [0, 0, 0], sizes = [8, 8, 16], strides = [1, 1, 1]} : vector<10x10x16xf32> to vector<8x8x16xf32>
    %3 = vector.shape_cast %2 : vector<8x8x16xf32> to vector<64x16xf32>
    %4 = vector.extract_strided_slice %1 {offsets = [0, 1, 0], sizes = [8, 8, 16], strides = [1, 1, 1]} : vector<10x10x16xf32> to vector<8x8x16xf32>
    %5 = vector.shape_cast %4 : vector<8x8x16xf32> to vector<64x16xf32>
    %6 = vector.extract_strided_slice %1 {offsets = [0, 2, 0], sizes = [8, 8, 16], strides = [1, 1, 1]} : vector<10x10x16xf32> to vector<8x8x16xf32>
    %7 = vector.shape_cast %6 : vector<8x8x16xf32> to vector<64x16xf32>
    %8 = vector.extract_strided_slice %1 {offsets = [1, 0, 0], sizes = [8, 8, 16], strides = [1, 1, 1]} : vector<10x10x16xf32> to vector<8x8x16xf32>
    %9 = vector.shape_cast %8 : vector<8x8x16xf32> to vector<64x16xf32>
    %10 = vector.extract_strided_slice %1 {offsets = [1, 1, 0], sizes = [8, 8, 16], strides = [1, 1, 1]} : vector<10x10x16xf32> to vector<8x8x16xf32>
    %11 = vector.shape_cast %10 : vector<8x8x16xf32> to vector<64x16xf32>
    %12 = vector.extract_strided_slice %1 {offsets = [1, 2, 0], sizes = [8, 8, 16], strides = [1, 1, 1]} : vector<10x10x16xf32> to vector<8x8x16xf32>
    %13 = vector.shape_cast %12 : vector<8x8x16xf32> to vector<64x16xf32>
    %14 = vector.extract_strided_slice %1 {offsets = [2, 0, 0], sizes = [8, 8, 16], strides = [1, 1, 1]} : vector<10x10x16xf32> to vector<8x8x16xf32>
    %15 = vector.shape_cast %14 : vector<8x8x16xf32> to vector<64x16xf32>
    %16 = vector.extract_strided_slice %1 {offsets = [2, 1, 0], sizes = [8, 8, 16], strides = [1, 1, 1]} : vector<10x10x16xf32> to vector<8x8x16xf32>
    %17 = vector.shape_cast %16 : vector<8x8x16xf32> to vector<64x16xf32>
    %18 = vector.extract_strided_slice %1 {offsets = [2, 2, 0], sizes = [8, 8, 16], strides = [1, 1, 1]} : vector<10x10x16xf32> to vector<8x8x16xf32>
    %19 = vector.shape_cast %18 : vector<8x8x16xf32> to vector<64x16xf32>
    %20 = tpu.concatenate %3, %5, %7, %9, %11, %13, %15, %17, %19 in 1 : vector<64x16xf32>, vector<64x16xf32>, vector<64x16xf32>, vector<64x16xf32>, vector<64x16xf32>, vector<64x16xf32>, vector<64x16xf32>, vector<64x16xf32>, vector<64x16xf32> -> vector<64x144xf32>
    %c0_3 = arith.constant 0 : index
    %c0_4 = arith.constant 0 : index
    %21 = vector.load %arg3[%c0_3, %c0_4] : memref<144x32xf32, #tpu.memory_space<vmem>>, vector<144x32xf32>
    %cst = arith.constant dense<0.000000e+00> : vector<64x32xf32>
    %22 = tpu.matmul %20, %21, %cst {dimension_numbers = #tpu.dot_dimension_numbers<[1], [0], [0], [1], [0, 0, 1, 1], [], []>} : vector<64x144xf32>, vector<144x32xf32>, vector<64x32xf32> -> vector<64x32xf32>
    %c0_5 = arith.constant 0 : index
    %c0_6 = arith.constant 0 : index
    %23 = vector.load %arg4[%c0_5, %c0_6] : memref<1x32xf32, #tpu.memory_space<vmem>>, vector<1x32xf32>
    %24 = vector.shape_cast %23 : vector<1x32xf32> to vector<32xf32>
    %25 = vector.shape_cast %24 : vector<32xf32> to vector<1x32xf32>
    %26 = vector.broadcast %25 : vector<1x32xf32> to vector<64x32xf32>
    %27 = arith.addf %22, %26 : vector<64x32xf32>
    %cst_7 = arith.constant 0.000000e+00 : f32
    %28 = vector.broadcast %cst_7 : f32 to vector<10x10x32xf32>
    %c0_8 = arith.constant 0 : index
    %c0_9 = arith.constant 0 : index
    %c0_10 = arith.constant 0 : index
    %29 = vector.load %arg11[%c0_8, %c0_9, %c0_10] : memref<10x10x32xf32, #tpu.memory_space<vmem>>, vector<10x10x32xf32>
    tpu.vector_store %arg11[%c0_8, %c0_9, %c0_10], %28 {strides = array<i32>} : memref<10x10x32xf32, #tpu.memory_space<vmem>>, vector<10x10x32xf32>,
    %30 = vector.shape_cast %27 : vector<64x32xf32> to vector<8x8x32xf32>
    %c1 = arith.constant 1 : index
    %c1_11 = arith.constant 1 : index
    %c0_12 = arith.constant 0 : index
    %31 = vector.load %arg11[%c1, %c1_11, %c0_12] : memref<10x10x32xf32, #tpu.memory_space<vmem>>, vector<8x8x32xf32>
    tpu.vector_store %arg11[%c1, %c1_11, %c0_12], %30 {strides = array<i32>} : memref<10x10x32xf32, #tpu.memory_space<vmem>>, vector<8x8x32xf32>,
    %c0_13 = arith.constant 0 : index
    %c0_14 = arith.constant 0 : index
    %c0_15 = arith.constant 0 : index
    %32 = vector.load %arg11[%c0_13, %c0_14, %c0_15] : memref<10x10x32xf32, #tpu.memory_space<vmem>>, vector<10x10x32xf32>
    %33 = vector.extract_strided_slice %32 {offsets = [0, 0, 0], sizes = [8, 8, 32], strides = [1, 1, 1]} : vector<10x10x32xf32> to vector<8x8x32xf32>
    %34 = vector.shape_cast %33 : vector<8x8x32xf32> to vector<64x32xf32>
    %35 = vector.extract_strided_slice %32 {offsets = [0, 1, 0], sizes = [8, 8, 32], strides = [1, 1, 1]} : vector<10x10x32xf32> to vector<8x8x32xf32>
    %36 = vector.shape_cast %35 : vector<8x8x32xf32> to vector<64x32xf32>
    %37 = vector.extract_strided_slice %32 {offsets = [0, 2, 0], sizes = [8, 8, 32], strides = [1, 1, 1]} : vector<10x10x32xf32> to vector<8x8x32xf32>
    %38 = vector.shape_cast %37 : vector<8x8x32xf32> to vector<64x32xf32>
    %39 = vector.extract_strided_slice %32 {offsets = [1, 0, 0], sizes = [8, 8, 32], strides = [1, 1, 1]} : vector<10x10x32xf32> to vector<8x8x32xf32>
    %40 = vector.shape_cast %39 : vector<8x8x32xf32> to vector<64x32xf32>
    %41 = vector.extract_strided_slice %32 {offsets = [1, 1, 0], sizes = [8, 8, 32], strides = [1, 1, 1]} : vector<10x10x32xf32> to vector<8x8x32xf32>
    %42 = vector.shape_cast %41 : vector<8x8x32xf32> to vector<64x32xf32>
    %43 = vector.extract_strided_slice %32 {offsets = [1, 2, 0], sizes = [8, 8, 32], strides = [1, 1, 1]} : vector<10x10x32xf32> to vector<8x8x32xf32>
    %44 = vector.shape_cast %43 : vector<8x8x32xf32> to vector<64x32xf32>
    %45 = vector.extract_strided_slice %32 {offsets = [2, 0, 0], sizes = [8, 8, 32], strides = [1, 1, 1]} : vector<10x10x32xf32> to vector<8x8x32xf32>
    %46 = vector.shape_cast %45 : vector<8x8x32xf32> to vector<64x32xf32>
    %47 = vector.extract_strided_slice %32 {offsets = [2, 1, 0], sizes = [8, 8, 32], strides = [1, 1, 1]} : vector<10x10x32xf32> to vector<8x8x32xf32>
    %48 = vector.shape_cast %47 : vector<8x8x32xf32> to vector<64x32xf32>
    %49 = vector.extract_strided_slice %32 {offsets = [2, 2, 0], sizes = [8, 8, 32], strides = [1, 1, 1]} : vector<10x10x32xf32> to vector<8x8x32xf32>
    %50 = vector.shape_cast %49 : vector<8x8x32xf32> to vector<64x32xf32>
    %51 = tpu.concatenate %34, %36, %38, %40, %42, %44, %46, %48, %50 in 1 : vector<64x32xf32>, vector<64x32xf32>, vector<64x32xf32>, vector<64x32xf32>, vector<64x32xf32>, vector<64x32xf32>, vector<64x32xf32>, vector<64x32xf32>, vector<64x32xf32> -> vector<64x288xf32>
    %c0_16 = arith.constant 0 : index
    %c0_17 = arith.constant 0 : index
    %c0_18 = arith.constant 0 : index
    %c0_19 = arith.constant 0 : index
    %52 = vector.load %arg2[%c0_16, %c0_17, %c0_18, %c0_19] : memref<1x10x10x32xf32, #tpu.memory_space<vmem>>, vector<1x10x10x32xf32>
    %53 = vector.shape_cast %52 : vector<1x10x10x32xf32> to vector<10x10x32xf32>
    %54 = vector.extract_strided_slice %53 {offsets = [0, 0, 0], sizes = [8, 8, 32], strides = [1, 1, 1]} : vector<10x10x32xf32> to vector<8x8x32xf32>
    %55 = vector.shape_cast %54 : vector<8x8x32xf32> to vector<64x32xf32>
    %56 = vector.extract_strided_slice %53 {offsets = [0, 1, 0], sizes = [8, 8, 32], strides = [1, 1, 1]} : vector<10x10x32xf32> to vector<8x8x32xf32>
    %57 = vector.shape_cast %56 : vector<8x8x32xf32> to vector<64x32xf32>
    %58 = vector.extract_strided_slice %53 {offsets = [0, 2, 0], sizes = [8, 8, 32], strides = [1, 1, 1]} : vector<10x10x32xf32> to vector<8x8x32xf32>
    %59 = vector.shape_cast %58 : vector<8x8x32xf32> to vector<64x32xf32>
    %60 = vector.extract_strided_slice %53 {offsets = [1, 0, 0], sizes = [8, 8, 32], strides = [1, 1, 1]} : vector<10x10x32xf32> to vector<8x8x32xf32>
    %61 = vector.shape_cast %60 : vector<8x8x32xf32> to vector<64x32xf32>
    %62 = vector.extract_strided_slice %53 {offsets = [1, 1, 0], sizes = [8, 8, 32], strides = [1, 1, 1]} : vector<10x10x32xf32> to vector<8x8x32xf32>
    %63 = vector.shape_cast %62 : vector<8x8x32xf32> to vector<64x32xf32>
    %64 = vector.extract_strided_slice %53 {offsets = [1, 2, 0], sizes = [8, 8, 32], strides = [1, 1, 1]} : vector<10x10x32xf32> to vector<8x8x32xf32>
    %65 = vector.shape_cast %64 : vector<8x8x32xf32> to vector<64x32xf32>
    %66 = vector.extract_strided_slice %53 {offsets = [2, 0, 0], sizes = [8, 8, 32], strides = [1, 1, 1]} : vector<10x10x32xf32> to vector<8x8x32xf32>
    %67 = vector.shape_cast %66 : vector<8x8x32xf32> to vector<64x32xf32>
    %68 = vector.extract_strided_slice %53 {offsets = [2, 1, 0], sizes = [8, 8, 32], strides = [1, 1, 1]} : vector<10x10x32xf32> to vector<8x8x32xf32>
    %69 = vector.shape_cast %68 : vector<8x8x32xf32> to vector<64x32xf32>
    %70 = vector.extract_strided_slice %53 {offsets = [2, 2, 0], sizes = [8, 8, 32], strides = [1, 1, 1]} : vector<10x10x32xf32> to vector<8x8x32xf32>
    %71 = vector.shape_cast %70 : vector<8x8x32xf32> to vector<64x32xf32>
    %72 = tpu.concatenate %55, %57, %59, %61, %63, %65, %67, %69, %71 in 1 : vector<64x32xf32>, vector<64x32xf32>, vector<64x32xf32>, vector<64x32xf32>, vector<64x32xf32>, vector<64x32xf32>, vector<64x32xf32>, vector<64x32xf32>, vector<64x32xf32> -> vector<64x288xf32>
    %c0_20 = arith.constant 0 : index
    %c0_21 = arith.constant 0 : index
    %73 = vector.load %arg5[%c0_20, %c0_21] : memref<288x32xf32, #tpu.memory_space<vmem>>, vector<288x32xf32>
    %cst_22 = arith.constant dense<0.000000e+00> : vector<64x32xf32>
    %74 = tpu.matmul %51, %73, %cst_22 {dimension_numbers = #tpu.dot_dimension_numbers<[1], [0], [0], [1], [0, 0, 1, 1], [], []>} : vector<64x288xf32>, vector<288x32xf32>, vector<64x32xf32> -> vector<64x32xf32>
    %c0_23 = arith.constant 0 : index
    %c0_24 = arith.constant 0 : index
    %75 = vector.load %arg6[%c0_23, %c0_24] : memref<288x32xf32, #tpu.memory_space<vmem>>, vector<288x32xf32>
    %cst_25 = arith.constant dense<0.000000e+00> : vector<64x32xf32>
    %76 = tpu.matmul %72, %75, %cst_25 {dimension_numbers = #tpu.dot_dimension_numbers<[1], [0], [0], [1], [0, 0, 1, 1], [], []>} : vector<64x288xf32>, vector<288x32xf32>, vector<64x32xf32> -> vector<64x32xf32>
    %77 = arith.addf %74, %76 : vector<64x32xf32>
    %c0_26 = arith.constant 0 : index
    %c0_27 = arith.constant 0 : index
    %78 = vector.load %arg7[%c0_26, %c0_27] : memref<1x32xf32, #tpu.memory_space<vmem>>, vector<1x32xf32>
    %79 = vector.shape_cast %78 : vector<1x32xf32> to vector<32xf32>
    %80 = vector.shape_cast %79 : vector<32xf32> to vector<1x32xf32>
    %81 = vector.broadcast %80 : vector<1x32xf32> to vector<64x32xf32>
    %82 = arith.addf %77, %81 : vector<64x32xf32>
    %cst_28 = arith.constant 0.000000e+00 : f32
    %83 = vector.broadcast %cst_28 : f32 to vector<64x32xf32>
    %84 = arith.maximumf %82, %83 : vector<64x32xf32>
    %cst_29 = arith.constant 0.000000e+00 : f32
    %85 = vector.broadcast %cst_29 : f32 to vector<10x10x32xf32>
    %c0_30 = arith.constant 0 : index
    %c0_31 = arith.constant 0 : index
    %c0_32 = arith.constant 0 : index
    %86 = vector.load %arg12[%c0_30, %c0_31, %c0_32] : memref<10x10x32xf32, #tpu.memory_space<vmem>>, vector<10x10x32xf32>
    tpu.vector_store %arg12[%c0_30, %c0_31, %c0_32], %85 {strides = array<i32>} : memref<10x10x32xf32, #tpu.memory_space<vmem>>, vector<10x10x32xf32>,
    %87 = vector.shape_cast %84 : vector<64x32xf32> to vector<8x8x32xf32>
    %c1_33 = arith.constant 1 : index
    %c1_34 = arith.constant 1 : index
    %c0_35 = arith.constant 0 : index
    %88 = vector.load %arg12[%c1_33, %c1_34, %c0_35] : memref<10x10x32xf32, #tpu.memory_space<vmem>>, vector<8x8x32xf32>
    tpu.vector_store %arg12[%c1_33, %c1_34, %c0_35], %87 {strides = array<i32>} : memref<10x10x32xf32, #tpu.memory_space<vmem>>, vector<8x8x32xf32>,
    %c0_36 = arith.constant 0 : index
    %c0_37 = arith.constant 0 : index
    %c0_38 = arith.constant 0 : index
    %89 = vector.load %arg12[%c0_36, %c0_37, %c0_38] : memref<10x10x32xf32, #tpu.memory_space<vmem>>, vector<10x10x32xf32>
    %90 = vector.extract_strided_slice %89 {offsets = [0, 0, 0], sizes = [8, 8, 32], strides = [1, 1, 1]} : vector<10x10x32xf32> to vector<8x8x32xf32>
    %91 = vector.shape_cast %90 : vector<8x8x32xf32> to vector<64x32xf32>
    %92 = vector.extract_strided_slice %89 {offsets = [0, 1, 0], sizes = [8, 8, 32], strides = [1, 1, 1]} : vector<10x10x32xf32> to vector<8x8x32xf32>
    %93 = vector.shape_cast %92 : vector<8x8x32xf32> to vector<64x32xf32>
    %94 = vector.extract_strided_slice %89 {offsets = [0, 2, 0], sizes = [8, 8, 32], strides = [1, 1, 1]} : vector<10x10x32xf32> to vector<8x8x32xf32>
    %95 = vector.shape_cast %94 : vector<8x8x32xf32> to vector<64x32xf32>
    %96 = vector.extract_strided_slice %89 {offsets = [1, 0, 0], sizes = [8, 8, 32], strides = [1, 1, 1]} : vector<10x10x32xf32> to vector<8x8x32xf32>
    %97 = vector.shape_cast %96 : vector<8x8x32xf32> to vector<64x32xf32>
    %98 = vector.extract_strided_slice %89 {offsets = [1, 1, 0], sizes = [8, 8, 32], strides = [1, 1, 1]} : vector<10x10x32xf32> to vector<8x8x32xf32>
    %99 = vector.shape_cast %98 : vector<8x8x32xf32> to vector<64x32xf32>
    %100 = vector.extract_strided_slice %89 {offsets = [1, 2, 0], sizes = [8, 8, 32], strides = [1, 1, 1]} : vector<10x10x32xf32> to vector<8x8x32xf32>
    %101 = vector.shape_cast %100 : vector<8x8x32xf32> to vector<64x32xf32>
    %102 = vector.extract_strided_slice %89 {offsets = [2, 0, 0], sizes = [8, 8, 32], strides = [1, 1, 1]} : vector<10x10x32xf32> to vector<8x8x32xf32>
    %103 = vector.shape_cast %102 : vector<8x8x32xf32> to vector<64x32xf32>
    %104 = vector.extract_strided_slice %89 {offsets = [2, 1, 0], sizes = [8, 8, 32], strides = [1, 1, 1]} : vector<10x10x32xf32> to vector<8x8x32xf32>
    %105 = vector.shape_cast %104 : vector<8x8x32xf32> to vector<64x32xf32>
    %106 = vector.extract_strided_slice %89 {offsets = [2, 2, 0], sizes = [8, 8, 32], strides = [1, 1, 1]} : vector<10x10x32xf32> to vector<8x8x32xf32>
    %107 = vector.shape_cast %106 : vector<8x8x32xf32> to vector<64x32xf32>
    %108 = tpu.concatenate %91, %93, %95, %97, %99, %101, %103, %105, %107 in 1 : vector<64x32xf32>, vector<64x32xf32>, vector<64x32xf32>, vector<64x32xf32>, vector<64x32xf32>, vector<64x32xf32>, vector<64x32xf32>, vector<64x32xf32>, vector<64x32xf32> -> vector<64x288xf32>
    %c0_39 = arith.constant 0 : index
    %c0_40 = arith.constant 0 : index
    %109 = vector.load %arg8[%c0_39, %c0_40] : memref<288x32xf32, #tpu.memory_space<vmem>>, vector<288x32xf32>
    %cst_41 = arith.constant dense<0.000000e+00> : vector<64x32xf32>
    %110 = tpu.matmul %108, %109, %cst_41 {dimension_numbers = #tpu.dot_dimension_numbers<[1], [0], [0], [1], [0, 0, 1, 1], [], []>} : vector<64x288xf32>, vector<288x32xf32>, vector<64x32xf32> -> vector<64x32xf32>
    %c0_42 = arith.constant 0 : index
    %c0_43 = arith.constant 0 : index
    %111 = vector.load %arg9[%c0_42, %c0_43] : memref<1x32xf32, #tpu.memory_space<vmem>>, vector<1x32xf32>
    %112 = vector.shape_cast %111 : vector<1x32xf32> to vector<32xf32>
    %113 = vector.shape_cast %112 : vector<32xf32> to vector<1x32xf32>
    %114 = vector.broadcast %113 : vector<1x32xf32> to vector<64x32xf32>
    %115 = arith.addf %110, %114 : vector<64x32xf32>
    %cst_44 = arith.constant 0.000000e+00 : f32
    %116 = vector.broadcast %cst_44 : f32 to vector<64x32xf32>
    %117 = arith.maximumf %115, %116 : vector<64x32xf32>
    %c0_45 = arith.constant 0 : index
    %c0_46 = arith.constant 0 : index
    %c0_47 = arith.constant 0 : index
    %118 = vector.load %arg10[%c0_45, %c0_46, %c0_47] : memref<1x64x32xf32, #tpu.memory_space<vmem>>, vector<1x64x32xf32>
    %119 = vector.shape_cast %118 : vector<1x64x32xf32> to vector<64x32xf32>
    %120 = vector.shape_cast %117 : vector<64x32xf32> to vector<1x64x32xf32>
    tpu.vector_store %arg10[%c0_45, %c0_46, %c0_47], %120 {strides = array<i32>} : memref<1x64x32xf32, #tpu.memory_space<vmem>>, vector<1x64x32xf32>,
    return
  }
  func.func @transform_0(%arg0: i32) -> (i32, i32, i32, i32) {
    %c0_i32 = arith.constant 0 : i32
    %c0_i32_0 = arith.constant 0 : i32
    %c0_i32_1 = arith.constant 0 : i32
    %c0_i32_2 = arith.constant 0 : i32
    return %arg0, %c0_i32, %c0_i32_0, %c0_i32_1 : i32, i32, i32, i32
  }
  func.func @transform_1(%arg0: i32) -> (i32, i32, i32, i32) {
    %c0_i32 = arith.constant 0 : i32
    %c0_i32_0 = arith.constant 0 : i32
    %c0_i32_1 = arith.constant 0 : i32
    %c0_i32_2 = arith.constant 0 : i32
    return %arg0, %c0_i32, %c0_i32_0, %c0_i32_1 : i32, i32, i32, i32
  }
  func.func @transform_2(%arg0: i32) -> (i32, i32) {
    %c0_i32 = arith.constant 0 : i32
    %c0_i32_0 = arith.constant 0 : i32
    %c0_i32_1 = arith.constant 0 : i32
    return %c0_i32, %c0_i32_0 : i32, i32
  }
  func.func @transform_3(%arg0: i32) -> (i32, i32) {
    %c0_i32 = arith.constant 0 : i32
    %c0_i32_0 = arith.constant 0 : i32
    %c0_i32_1 = arith.constant 0 : i32
    return %c0_i32, %c0_i32_0 : i32, i32
  }
  func.func @transform_4(%arg0: i32) -> (i32, i32) {
    %c0_i32 = arith.constant 0 : i32
    %c0_i32_0 = arith.constant 0 : i32
    %c0_i32_1 = arith.constant 0 : i32
    return %c0_i32, %c0_i32_0 : i32, i32
  }
  func.func @transform_5(%arg0: i32) -> (i32, i32) {
    %c0_i32 = arith.constant 0 : i32
    %c0_i32_0 = arith.constant 0 : i32
    %c0_i32_1 = arith.constant 0 : i32
    return %c0_i32, %c0_i32_0 : i32, i32
  }
  func.func @transform_6(%arg0: i32) -> (i32, i32) {
    %c0_i32 = arith.constant 0 : i32
    %c0_i32_0 = arith.constant 0 : i32
    %c0_i32_1 = arith.constant 0 : i32
    return %c0_i32, %c0_i32_0 : i32, i32
  }
  func.func @transform_7(%arg0: i32) -> (i32, i32) {
    %c0_i32 = arith.constant 0 : i32
    %c0_i32_0 = arith.constant 0 : i32
    %c0_i32_1 = arith.constant 0 : i32
    return %c0_i32, %c0_i32_0 : i32, i32
  }
  func.func @transform_8(%arg0: i32) -> (i32, i32) {
    %c0_i32 = arith.constant 0 : i32
    %c0_i32_0 = arith.constant 0 : i32
    %c0_i32_1 = arith.constant 0 : i32
    return %c0_i32, %c0_i32_0 : i32, i32
  }
  func.func @transform_9(%arg0: i32) -> (i32, i32, i32) {
    %c0_i32 = arith.constant 0 : i32
    %c0_i32_0 = arith.constant 0 : i32
    %c0_i32_1 = arith.constant 0 : i32
    return %arg0, %c0_i32, %c0_i32_0 : i32, i32, i32
  }
}

</mosaic_0001>

<llo_original>
// kernel: tile.18
$region0: #{tile.18}
  #allocation0 [shape = 's32[1]{0}', space=sflag, size = 0x4, scoped, tag = 'scoped memory for tile.18']
  %s0 = inlined_call_operand.vmem [shape: f32[8], index: 0, kind: input, shape index: {}]
  %s1 = inlined_call_operand.vmem [shape: f32[4,8], index: 1, kind: output, shape index: {}]
  // Predicated region
  $region2: #{tile.18} parent=0 // pred_check
    _
  $region3: #{tile.18} parent=0 // pred_check_branch
    %3 = sbr.rel (0) target = $region5
  $region4: #{tile.18} parent=0 // pred_region
    _
  $region5: #{tile.18} parent=0 // pred_fallthru
    _
  %v4 = vld [vmem:[%s0] ss:$0 sm:$0xff]
  %5 = vst [vmem:[%s1] sm:$0xf] %v4

// kernel: tile.19
$region0: #{tile.19}
  %s0 = inlined_call_operand.vmem [shape: f32[4,8], index: 0, kind: input, shape index: {}]
  %s1 = inlined_call_operand.vmem [shape: f32[1,32], index: 1, kind: output, shape index: {}]
  $region1: #{tile.19} parent=0
    #allocation0 [shape = 'u8[4096]{0}', space=vmem, size = 0x1000, scoped, tag = 'scoped mem for output reshape']
    #allocation1 [shape = 'u8[4096]{0}', space=vmem, size = 0x1000, scoped, tag = 'scoped mem for input reshape']
    %s3 = sshllo.u32 0, 4
    %v4 = vld [vmem:[%s0] sm:%s3]
    %5 = vst [vmem:[#allocation1] sm:%s3] %v4
    %v6 = vld [vmem:[#allocation1] sm:$0x1]
    %vm7 = vcmask 64512
    %8 = vst.msk [vmem:[#allocation0] sm:$0x1] %vm7, %v6
    %s9 = scalar_lea.vmem [#allocation1], 3
    %v10 = vld [vmem:[%s9] sm:$0x1]
    %11 = vrot.lane.b32.xlu0 %v10, 24
    %v12 = vpop.permute.xlu0 %11
    %vm13 = vcmask 261312
    %14 = vst.msk [vmem:[#allocation0] sm:$0x1] %vm13, %v12
    %s15 = scalar_lea.vmem [#allocation1], 2
    %v16 = vld [vmem:[%s15] sm:$0x1]
    %17 = vrot.lane.b32.xlu0 %v16, 16
    %v18 = vpop.permute.xlu0 %17
    %vm19 = vcmask 195712
    %20 = vst.msk [vmem:[#allocation0] sm:$0x1] %vm19, %v18
    %s21 = scalar_lea.vmem [#allocation1], 1
    %v22 = vld [vmem:[%s21] sm:$0x1]
    %23 = vrot.lane.b32.xlu0 %v22, 8
    %v24 = vpop.permute.xlu0 %23
    %vm25 = vcmask 130112
    %26 = vst.msk [vmem:[#allocation0] sm:$0x1] %vm25, %v24
    %s28 = sshllo.u32 0, 1
    %v30 = vld [vmem:[#allocation0] sm:%s28]
    %s31 = sshllo.u32 0, 1
    %32 = vst [vmem:[%s1] sm:%s31] %v30

// kernel: unet_up_forward.1
$region0: #{unet_up_forward.1}
  #allocation0 [shape = 'u32[]', space=smem, size = 0x4, offset = 0x4, fixed_abs, tag = 'smem constant byte address 0x4 - core index']
  #allocation1 [shape = 'u32[144,128]{1,0:T(1,128)}', space=vmem, size = 0x12000, scoped, tag = 'internal scratch']
  #allocation2 [shape = 'f32[10,10,32]{2,1,0:T(8,128)}', space=vmem, size = 0x14000, scoped, tag = 'scratch operand']
  #allocation3 [shape = 'f32[10,10,32]{2,1,0:T(8,128)}', space=vmem, size = 0x14000, scoped, tag = 'scratch operand']
  %s0 = inlined_call_operand.vmem [shape: f32[2,10,10,16], index: 0, kind: input, shape index: {}]
  %s1 = inlined_call_operand.vmem [shape: f32[2,10,10,32], index: 1, kind: input, shape index: {}]
  %s2 = inlined_call_operand.vmem [shape: f32[144,32], index: 2, kind: input, shape index: {}]
  %s3 = inlined_call_operand.vmem [shape: f32[1,32], index: 3, kind: input, shape index: {}]
  %s4 = inlined_call_operand.vmem [shape: f32[288,32], index: 4, kind: input, shape index: {}]
  %s5 = inlined_call_operand.vmem [shape: f32[288,32], index: 5, kind: input, shape index: {}]
  %s6 = inlined_call_operand.vmem [shape: f32[1,32], index: 6, kind: input, shape index: {}]
  %s7 = inlined_call_operand.vmem [shape: f32[288,32], index: 7, kind: input, shape index: {}]
  %s8 = inlined_call_operand.vmem [shape: f32[1,32], index: 8, kind: input, shape index: {}]
  %s9 = inlined_call_operand.vmem [shape: f32[2,64,32], index: 9, kind: output, shape index: {}]
  %s10 = sld [smem:[#allocation0]]
  $region69: #{unet_up_forward.1} parent=0
    _
  %s12 = ssub.s32 1, %s10
  %s13 = scalar_select 0, %s12, %s10
  loop: start=0, step=1, limit=4
  $region2: #{unet_up_forward.1} parent=0 // loop_pre_header
    _
  $region3: #{unet_up_forward.1} parent=0 // loop_header
    %s15 = sphi 0, %s19
    %p16 = scmp.ge.s32.totalorder %s15, 4
    %s25 = sphi 0, %s27
    %s28 = sphi 0, %s25
    %s29 = sphi 0, %s28
    %s45 = sphi 0, %s29
    %s51 = sphi 0, %s53
    %s54 = sphi 0, %s51
    %s55 = sphi 0, %s54
    %s71 = sphi 0, %s55
    %s75 = sphi 0, %s75
    %s77 = sphi 0, %s75
    %s78 = sphi 0, %s77
    %s92 = sphi 0, %s78
    %s96 = sphi 0, %s96
    %s98 = sphi 0, %s96
    %s99 = sphi 0, %s98
    %s113 = sphi 0, %s99
    %s117 = sphi 0, %s117
    %s119 = sphi 0, %s117
    %s120 = sphi 0, %s119
    %s134 = sphi 0, %s120
    %s138 = sphi 0, %s138
    %s140 = sphi 0, %s138
    %s141 = sphi 0, %s140
    %s155 = sphi 0, %s141
    %s159 = sphi 0, %s159
    %s161 = sphi 0, %s159
    %s162 = sphi 0, %s161
    %s176 = sphi 0, %s162
    %s180 = sphi 0, %s180
    %s182 = sphi 0, %s180
    %s183 = sphi 0, %s182
    %s197 = sphi 0, %s183
    %s201 = sphi 0, %s201
    %s203 = sphi 0, %s201
    %s204 = sphi 0, %s203
    %s218 = sphi 0, %s204
    %s224 = sphi 0, %s226
    %s227 = sphi 0, %s224
    %s228 = sphi 0, %s227
    %s244 = sphi 0, %s228
  $region4: #{unet_up_forward.1} parent=0 // loop_header_branch
    %18 = sbr.rel (%p16) target = $region8
  $region5: #{unet_up_forward.1} parent=0 // loop_body
    %s20 = ssub.s32 %s15, 1
    %s21 = ssub.s32 %s15, 2
    %s22 = sadd.s32 %s15, 1
    %s23 = ssub.s32 %s15, %s22
    %p24 = scmp.eq.s32.totalorder %s23, 0
    %s26 = sadd.s32 %s25, 1
    %s27 = scalar_select %p24, %s25, %s26
    %p30 = pneg %p24
    %p31 = scmp.eq.s32.totalorder %s15, 1
    %p32 = por %p30, %p31
    %p33 = scmp.ne.s32.totalorder %s25, %s28
    %p34 = scmp.eq.s32.totalorder %s15, 0
    %p35 = por %p33, %p34
    %p36 = scmp.ne.s32.totalorder %s25, %s28
    %p37 = scmp.eq.s32.totalorder %s20, 1
    %p38 = por %p36, %p37
    %p39 = scmp.ne.s32.totalorder %s28, %s29
    %p40 = scmp.eq.s32.totalorder %s20, 0
    %p41 = por %p39, %p40
    %p42 = scmp.ne.s32.totalorder %s28, %s29
    %p43 = scmp.eq.s32.totalorder %s21, 1
    %p44 = por %p42, %p43
    %p46 = scmp.ne.s32.totalorder %s29, %s45
    %p47 = scmp.eq.s32.totalorder %s21, 0
    %p48 = por %p46, %p47
    %s49 = ssub.s32 %s15, %s22
    %p50 = scmp.eq.s32.totalorder %s49, 0
    %s52 = sadd.s32 %s51, 1
    %s53 = scalar_select %p50, %s51, %s52
    %p56 = pneg %p50
    %p57 = scmp.eq.s32.totalorder %s15, 1
    %p58 = por %p56, %p57
    %p59 = scmp.ne.s32.totalorder %s51, %s54
    %p60 = scmp.eq.s32.totalorder %s15, 0
    %p61 = por %p59, %p60
    %p62 = scmp.ne.s32.totalorder %s51, %s54
    %p63 = scmp.eq.s32.totalorder %s20, 1
    %p64 = por %p62, %p63
    %p65 = scmp.ne.s32.totalorder %s54, %s55
    %p66 = scmp.eq.s32.totalorder %s20, 0
    %p67 = por %p65, %p66
    %p68 = scmp.ne.s32.totalorder %s54, %s55
    %p69 = scmp.eq.s32.totalorder %s21, 1
    %p70 = por %p68, %p69
    %p72 = scmp.ne.s32.totalorder %s55, %s71
    %p73 = scmp.eq.s32.totalorder %s21, 0
    %p74 = por %p72, %p73
    %s76 = sadd.s32 %s75, 1
    %p79 = scmp.eq.s32.totalorder %s15, 1
    %p80 = scmp.ne.s32.totalorder %s75, %s77
    %p81 = scmp.eq.s32.totalorder %s15, 0
    %p82 = por %p80, %p81
    %p83 = scmp.ne.s32.totalorder %s75, %s77
    %p84 = scmp.eq.s32.totalorder %s20, 1
    %p85 = por %p83, %p84
    %p86 = scmp.ne.s32.totalorder %s77, %s78
    %p87 = scmp.eq.s32.totalorder %s20, 0
    %p88 = por %p86, %p87
    %p89 = scmp.ne.s32.totalorder %s77, %s78
    %p90 = scmp.eq.s32.totalorder %s21, 1
    %p91 = por %p89, %p90
    %p93 = scmp.ne.s32.totalorder %s78, %s92
    %p94 = scmp.eq.s32.totalorder %s21, 0
    %p95 = por %p93, %p94
    %s97 = sadd.s32 %s96, 1
    %p100 = scmp.eq.s32.totalorder %s15, 1
    %p101 = scmp.ne.s32.totalorder %s96, %s98
    %p102 = scmp.eq.s32.totalorder %s15, 0
    %p103 = por %p101, %p102
    %p104 = scmp.ne.s32.totalorder %s96, %s98
    %p105 = scmp.eq.s32.totalorder %s20, 1
    %p106 = por %p104, %p105
    %p107 = scmp.ne.s32.totalorder %s98, %s99
    %p108 = scmp.eq.s32.totalorder %s20, 0
    %p109 = por %p107, %p108
    %p110 = scmp.ne.s32.totalorder %s98, %s99
    %p111 = scmp.eq.s32.totalorder %s21, 1
    %p112 = por %p110, %p111
    %p114 = scmp.ne.s32.totalorder %s99, %s113
    %p115 = scmp.eq.s32.totalorder %s21, 0
    %p116 = por %p114, %p115
    %s118 = sadd.s32 %s117, 1
    %p121 = scmp.eq.s32.totalorder %s15, 1
    %p122 = scmp.ne.s32.totalorder %s117, %s119
    %p123 = scmp.eq.s32.totalorder %s15, 0
    %p124 = por %p122, %p123
    %p125 = scmp.ne.s32.totalorder %s117, %s119
    %p126 = scmp.eq.s32.totalorder %s20, 1
    %p127 = por %p125, %p126
    %p128 = scmp.ne.s32.totalorder %s119, %s120
    %p129 = scmp.eq.s32.totalorder %s20, 0
    %p130 = por %p128, %p129
    %p131 = scmp.ne.s32.totalorder %s119, %s120
    %p132 = scmp.eq.s32.totalorder %s21, 1
    %p133 = por %p131, %p132
    %p135 = scmp.ne.s32.totalorder %s120, %s134
    %p136 = scmp.eq.s32.totalorder %s21, 0
    %p137 = por %p135, %p136
    %s139 = sadd.s32 %s138, 1
    %p142 = scmp.eq.s32.totalorder %s15, 1
    %p143 = scmp.ne.s32.totalorder %s138, %s140
    %p144 = scmp.eq.s32.totalorder %s15, 0
    %p145 = por %p143, %p144
    %p146 = scmp.ne.s32.totalorder %s138, %s140
    %p147 = scmp.eq.s32.totalorder %s20, 1
    %p148 = por %p146, %p147
    %p149 = scmp.ne.s32.totalorder %s140, %s141
    %p150 = scmp.eq.s32.totalorder %s20, 0
    %p151 = por %p149, %p150
    %p152 = scmp.ne.s32.totalorder %s140, %s141
    %p153 = scmp.eq.s32.totalorder %s21, 1
    %p154 = por %p152, %p153
    %p156 = scmp.ne.s32.totalorder %s141, %s155
    %p157 = scmp.eq.s32.totalorder %s21, 0
    %p158 = por %p156, %p157
    %s160 = sadd.s32 %s159, 1
    %p163 = scmp.eq.s32.totalorder %s15, 1
    %p164 = scmp.ne.s32.totalorder %s159, %s161
    %p165 = scmp.eq.s32.totalorder %s15, 0
    %p166 = por %p164, %p165
    %p167 = scmp.ne.s32.totalorder %s159, %s161
    %p168 = scmp.eq.s32.totalorder %s20, 1
    %p169 = por %p167, %p168
    %p170 = scmp.ne.s32.totalorder %s161, %s162
    %p171 = scmp.eq.s32.totalorder %s20, 0
    %p172 = por %p170, %p171
    %p173 = scmp.ne.s32.totalorder %s161, %s162
    %p174 = scmp.eq.s32.totalorder %s21, 1
    %p175 = por %p173, %p174
    %p177 = scmp.ne.s32.totalorder %s162, %s176
    %p178 = scmp.eq.s32.totalorder %s21, 0
    %p179 = por %p177, %p178
    %s181 = sadd.s32 %s180, 1
    %p184 = scmp.eq.s32.totalorder %s15, 1
    %p185 = scmp.ne.s32.totalorder %s180, %s182
    %p186 = scmp.eq.s32.totalorder %s15, 0
    %p187 = por %p185, %p186
    %p188 = scmp.ne.s32.totalorder %s180, %s182
    %p189 = scmp.eq.s32.totalorder %s20, 1
    %p190 = por %p188, %p189
    %p191 = scmp.ne.s32.totalorder %s182, %s183
    %p192 = scmp.eq.s32.totalorder %s20, 0
    %p193 = por %p191, %p192
    %p194 = scmp.ne.s32.totalorder %s182, %s183
    %p195 = scmp.eq.s32.totalorder %s21, 1
    %p196 = por %p194, %p195
    %p198 = scmp.ne.s32.totalorder %s183, %s197
    %p199 = scmp.eq.s32.totalorder %s21, 0
    %p200 = por %p198, %p199
    %s202 = sadd.s32 %s201, 1
    %p205 = scmp.eq.s32.totalorder %s15, 1
    %p206 = scmp.ne.s32.totalorder %s201, %s203
    %p207 = scmp.eq.s32.totalorder %s15, 0
    %p208 = por %p206, %p207
    %p209 = scmp.ne.s32.totalorder %s201, %s203
    %p210 = scmp.eq.s32.totalorder %s20, 1
    %p211 = por %p209, %p210
    %p212 = scmp.ne.s32.totalorder %s203, %s204
    %p213 = scmp.eq.s32.totalorder %s20, 0
    %p214 = por %p212, %p213
    %p215 = scmp.ne.s32.totalorder %s203, %s204
    %p216 = scmp.eq.s32.totalorder %s21, 1
    %p217 = por %p215, %p216
    %p219 = scmp.ne.s32.totalorder %s204, %s218
    %p220 = scmp.eq.s32.totalorder %s21, 0
    %p221 = por %p219, %p220
    %s222 = ssub.s32 %s15, %s22
    %p223 = scmp.eq.s32.totalorder %s222, 0
    %s225 = sadd.s32 %s224, 1
    %s226 = scalar_select %p223, %s224, %s225
    %p229 = pneg %p223
    %p230 = scmp.eq.s32.totalorder %s15, 1
    %p231 = por %p229, %p230
    %p232 = scmp.ne.s32.totalorder %s224, %s227
    %p233 = scmp.eq.s32.totalorder %s15, 0
    %p234 = por %p232, %p233
    %p235 = scmp.ne.s32.totalorder %s224, %s227
    %p236 = scmp.eq.s32.totalorder %s20, 1
    %p237 = por %p235, %p236
    %p238 = scmp.ne.s32.totalorder %s227, %s228
    %p239 = scmp.eq.s32.totalorder %s20, 0
    %p240 = por %p238, %p239
    %p241 = scmp.ne.s32.totalorder %s227, %s228
    %p242 = scmp.eq.s32.totalorder %s21, 1
    %p243 = por %p241, %p242
    %p245 = scmp.ne.s32.totalorder %s228, %s244
    %p246 = scmp.eq.s32.totalorder %s21, 0
    %p247 = por %p245, %p246
    %p248 = scmp.le.s32.totalorder 1, %s15
    %p249 = scmp.lt.s32.totalorder %s15, 3
    %p250 = pnand %p248, %p249
    %p251 = pneg %p250
    // Predicated region
    $region9: #{unet_up_forward.1} parent=5 // pred_check
      _
    $region10: #{unet_up_forward.1} parent=5 // pred_check_branch
      %253 = sbr.rel (%p250) target = $region12
    $region11: #{unet_up_forward.1} parent=5 // pred_region
      %s254 = ssub.s32 %s15, 1
      // Predicated region
      $region13: #{unet_up_forward.1} parent=11 // pred_check
        %p255 = pneg %p88
      $region14: #{unet_up_forward.1} parent=11 // pred_check_branch
        %257 = sbr.rel (%p255) target = $region16
      $region15: #{unet_up_forward.1} parent=11 // pred_region
        _
      $region16: #{unet_up_forward.1} parent=11 // pred_fallthru
        _
      // Predicated region
      $region17: #{unet_up_forward.1} parent=11 // pred_check
        %p258 = pneg %p109
      $region18: #{unet_up_forward.1} parent=11 // pred_check_branch
        %260 = sbr.rel (%p258) target = $region20
      $region19: #{unet_up_forward.1} parent=11 // pred_region
        _
      $region20: #{unet_up_forward.1} parent=11 // pred_fallthru
        _
      // Predicated region
      $region21: #{unet_up_forward.1} parent=11 // pred_check
        %p261 = pneg %p130
      $region22: #{unet_up_forward.1} parent=11 // pred_check_branch
        %263 = sbr.rel (%p261) target = $region24
      $region23: #{unet_up_forward.1} parent=11 // pred_region
        _
      $region24: #{unet_up_forward.1} parent=11 // pred_fallthru
        _
      // Predicated region
      $region25: #{unet_up_forward.1} parent=11 // pred_check
        %p264 = pneg %p151
      $region26: #{unet_up_forward.1} parent=11 // pred_check_branch
        %266 = sbr.rel (%p264) target = $region28
      $region27: #{unet_up_forward.1} parent=11 // pred_region
        _
      $region28: #{unet_up_forward.1} parent=11 // pred_fallthru
        _
      // Predicated region
      $region29: #{unet_up_forward.1} parent=11 // pred_check
        %p267 = pneg %p172
      $region30: #{unet_up_forward.1} parent=11 // pred_check_branch
        %269 = sbr.rel (%p267) target = $region32
      $region31: #{unet_up_forward.1} parent=11 // pred_region
        _
      $region32: #{unet_up_forward.1} parent=11 // pred_fallthru
        _
      // Predicated region
      $region33: #{unet_up_forward.1} parent=11 // pred_check
        %p270 = pneg %p193
      $region34: #{unet_up_forward.1} parent=11 // pred_check_branch
        %272 = sbr.rel (%p270) target = $region36
      $region35: #{unet_up_forward.1} parent=11 // pred_region
        _
      $region36: #{unet_up_forward.1} parent=11 // pred_fallthru
        _
      // Predicated region
      $region37: #{unet_up_forward.1} parent=11 // pred_check
        %p273 = pneg %p214
      $region38: #{unet_up_forward.1} parent=11 // pred_check_branch
        %275 = sbr.rel (%p273) target = $region40
      $region39: #{unet_up_forward.1} parent=11 // pred_region
        _
      $region40: #{unet_up_forward.1} parent=11 // pred_fallthru
        _
    $region12: #{unet_up_forward.1} parent=5 // pred_fallthru
      _
    %p276 = scmp.lt.s32.totalorder %s15, 2
    // Predicated region
    $region41: #{unet_up_forward.1} parent=5 // pred_check
      %p277 = pneg %p276
    $region42: #{unet_up_forward.1} parent=5 // pred_check_branch
      %279 = sbr.rel (%p277) target = $region44
    $region43: #{unet_up_forward.1} parent=5 // pred_region
      // Predicated region
      $region45: #{unet_up_forward.1} parent=43 // pred_check
        %p280 = pneg %p35
      $region46: #{unet_up_forward.1} parent=43 // pred_check_branch
        %282 = sbr.rel (%p280) target = $region48
      $region47: #{unet_up_forward.1} parent=43 // pred_region
        %p283 = scmp.lt.s32.totalorder %s15, 1
        %s284 = scalar_select %p283, %s15, 1
        %s285 = smul.addr %s284, 20
        %s286 = smul.addr %s285, 8
        %s287 = scalar_lea.vmem %s0, %s286
      $region48: #{unet_up_forward.1} parent=43 // pred_fallthru
        _
      // Predicated region
      $region49: #{unet_up_forward.1} parent=43 // pred_check
        %p288 = pneg %p61
      $region50: #{unet_up_forward.1} parent=43 // pred_check_branch
        %290 = sbr.rel (%p288) target = $region52
      $region51: #{unet_up_forward.1} parent=43 // pred_region
        %p291 = scmp.lt.s32.totalorder %s15, 1
        %s292 = scalar_select %p291, %s15, 1
        %s293 = smul.addr %s292, 20
        %s294 = smul.addr %s293, 8
        %s295 = scalar_lea.vmem %s1, %s294
      $region52: #{unet_up_forward.1} parent=43 // pred_fallthru
        _
    $region44: #{unet_up_forward.1} parent=5 // pred_fallthru
      _
    %p296 = scmp.le.s32.totalorder 1, %s15
    %p297 = scmp.lt.s32.totalorder %s15, 3
    %p298 = pnand %p296, %p297
    %p299 = pneg %p298
    // Predicated region
    $region53: #{unet_up_forward.1} parent=5 // pred_check
      _
    $region54: #{unet_up_forward.1} parent=5 // pred_check_branch
      %301 = sbr.rel (%p298) target = $region56
    $region55: #{unet_up_forward.1} parent=5 // pred_region
      %s302 = ssub.s32 %s15, 1
      %p303 = scmp.lt.s32.totalorder %s20, 1
      %s304 = scalar_select %p303, %s20, 1
      %s305 = smul.addr %s304, 20
      %s306 = smul.addr %s305, 8
      %s307 = scalar_lea.vmem %s0, %s306
      %p308 = pneg %p41
      %p309 = pneg %p38
      %p310 = scmp.lt.s32.totalorder %s20, 1
      %s311 = scalar_select %p310, %s20, 1
      %s312 = smul.addr %s311, 20
      %s313 = smul.addr %s312, 8
      %s314 = scalar_lea.vmem %s1, %s313
      %p315 = pneg %p67
      %p316 = pneg %p64
      %p317 = pneg %p88
      %p318 = pneg %p85
      %p319 = pneg %p109
      %p320 = pneg %p106
      %p321 = pneg %p130
      %p322 = pneg %p127
      %p323 = pneg %p151
      %p324 = pneg %p148
      %p325 = pneg %p172
      %p326 = pneg %p169
      %p327 = pneg %p193
      %p328 = pneg %p190
      %p329 = pneg %p214
      %p330 = pneg %p211
      %p331 = pneg %p240
      %p332 = pneg %p237
      %p333 = scmp.lt.s32.totalorder %s20, 1
      %s334 = scalar_select %p333, %s20, 1
      %s335 = smul.addr %s334, 8
      %s336 = smul.addr %s335, 8
      %s337 = scalar_lea.vmem %s9, %s336
      %p338 = scmp.lt.s32.totalorder %s20, 1
      %s339 = scalar_select %p338, %s20, 1
      %s340 = smul.addr %s339, 20
      %s341 = smul.addr %s340, 8
      %s342 = scalar_lea.vmem %s0, %s341
      %p343 = scmp.lt.s32.totalorder %s20, 1
      %s344 = scalar_select %p343, %s20, 1
      %s345 = smul.addr %s344, 20
      %s346 = smul.addr %s345, 8
      %s347 = scalar_lea.vmem %s1, %s346
      %p348 = scmp.lt.s32.totalorder %s20, 1
      %s349 = scalar_select %p348, %s20, 1
      %s350 = smul.addr %s349, 8
      %s351 = smul.addr %s350, 8
      %s352 = scalar_lea.vmem %s9, %s351
      %v353 = vld [vmem:[%s342] sm:$0xff]
      %v354 = vld [vmem:[%s342 + $0x8] sm:$0x3]
      %v355 = vld [vmem:[%s342 + $0x10] sm:$0xff]
      %v356 = vld [vmem:[%s342 + $0x18] sm:$0x3]
      %v357 = vld [vmem:[%s342 + $0x20] sm:$0xff]
      %v358 = vld [vmem:[%s342 + $0x28] sm:$0x3]
      %v359 = vld [vmem:[%s342 + $0x30] sm:$0xff]
      %v360 = vld [vmem:[%s342 + $0x38] sm:$0x3]
      %v361 = vld [vmem:[%s342 + $0x40] sm:$0xff]
      %v362 = vld [vmem:[%s342 + $0x48] sm:$0x3]
      %v363 = vld [vmem:[%s342 + $0x50] sm:$0xff]
      %v364 = vld [vmem:[%s342 + $0x58] sm:$0x3]
      %v365 = vld [vmem:[%s342 + $0x60] sm:$0xff]
      %v366 = vld [vmem:[%s342 + $0x68] sm:$0x3]
      %v367 = vld [vmem:[%s342 + $0x70] sm:$0xff]
      %v368 = vld [vmem:[%s342 + $0x78] sm:$0x3]
      %v369 = vld [vmem:[%s342 + $0x80] sm:$0xff]
      %v370 = vld [vmem:[%s342 + $0x88] sm:$0x3]
      %v371 = vld [vmem:[%s342 + $0x90] sm:$0xff]
      %v372 = vld [vmem:[%s342 + $0x98] sm:$0x3]
      %vm389 = vcmask 1046528
      %v390 = vrot.slane %v353, 1
      %v391 = vrot.slane %v354, 1
      %v392 = vsel %vm389, %v390, %v391
      %v393 = vrot.slane %v355, 1
      %v394 = vrot.slane %v356, 1
      %v395 = vsel %vm389, %v393, %v394
      %v396 = vrot.slane %v357, 1
      %v397 = vrot.slane %v358, 1
      %v398 = vsel %vm389, %v396, %v397
      %v399 = vrot.slane %v359, 1
      %v400 = vrot.slane %v360, 1
      %v401 = vsel %vm389, %v399, %v400
      %v402 = vrot.slane %v361, 1
      %v403 = vrot.slane %v362, 1
      %v404 = vsel %vm389, %v402, %v403
      %v405 = vrot.slane %v363, 1
      %v406 = vrot.slane %v364, 1
      %v407 = vsel %vm389, %v405, %v406
      %v408 = vrot.slane %v365, 1
      %v409 = vrot.slane %v366, 1
      %v410 = vsel %vm389, %v408, %v409
      %v411 = vrot.slane %v367, 1
      %v412 = vrot.slane %v368, 1
      %v413 = vsel %vm389, %v411, %v412
      %vm414 = vcmask 1045504
      %v415 = vrot.slane %v353, 2
      %v416 = vrot.slane %v354, 2
      %v417 = vsel %vm414, %v415, %v416
      %v418 = vrot.slane %v355, 2
      %v419 = vrot.slane %v356, 2
      %v420 = vsel %vm414, %v418, %v419
      %v421 = vrot.slane %v357, 2
      %v422 = vrot.slane %v358, 2
      %v423 = vsel %vm414, %v421, %v422
      %v424 = vrot.slane %v359, 2
      %v425 = vrot.slane %v360, 2
      %v426 = vsel %vm414, %v424, %v425
      %v427 = vrot.slane %v361, 2
      %v428 = vrot.slane %v362, 2
      %v429 = vsel %vm414, %v427, %v428
      %v430 = vrot.slane %v363, 2
      %v431 = vrot.slane %v364, 2
      %v432 = vsel %vm414, %v430, %v431
      %v433 = vrot.slane %v365, 2
      %v434 = vrot.slane %v366, 2
      %v435 = vsel %vm414, %v433, %v434
      %v436 = vrot.slane %v367, 2
      %v437 = vrot.slane %v368, 2
      %v438 = vsel %vm414, %v436, %v437
      %v441 = vrot.slane %v369, 1
      %v442 = vrot.slane %v370, 1
      %v443 = vsel %vm389, %v441, %v442
      %v444 = vrot.slane %v369, 2
      %v445 = vrot.slane %v370, 2
      %v446 = vsel %vm414, %v444, %v445
      %v449 = vrot.slane %v371, 1
      %v450 = vrot.slane %v372, 1
      %v451 = vsel %vm389, %v449, %v450
      %v452 = vrot.slane %v371, 2
      %v453 = vrot.slane %v372, 2
      %v454 = vsel %vm414, %v452, %v453
      %455 = vrot.lane.b32.xlu0 %v392, 16
      %v456 = vpop.permute.xlu0 %455
      %457 = vrot.lane.b32.xlu0 %v395, 16
      %v458 = vpop.permute.xlu0 %457
      %459 = vrot.lane.b32.xlu0 %v398, 16
      %v460 = vpop.permute.xlu0 %459
      %461 = vrot.lane.b32.xlu0 %v401, 16
      %v462 = vpop.permute.xlu0 %461
      %463 = vrot.lane.b32.xlu0 %v404, 16
      %v464 = vpop.permute.xlu0 %463
      %465 = vrot.lane.b32.xlu0 %v407, 16
      %v466 = vpop.permute.xlu0 %465
      %467 = vrot.lane.b32.xlu0 %v410, 16
      %v468 = vpop.permute.xlu0 %467
      %469 = vrot.lane.b32.xlu0 %v413, 16
      %v470 = vpop.permute.xlu0 %469
      %479 = vrot.lane.b32.xlu0 %v417, 32
      %v480 = vpop.permute.xlu0 %479
      %481 = vrot.lane.b32.xlu0 %v420, 32
      %v482 = vpop.permute.xlu0 %481
      %483 = vrot.lane.b32.xlu0 %v423, 32
      %v484 = vpop.permute.xlu0 %483
      %485 = vrot.lane.b32.xlu0 %v426, 32
      %v486 = vpop.permute.xlu0 %485
      %487 = vrot.lane.b32.xlu0 %v429, 32
      %v488 = vpop.permute.xlu0 %487
      %489 = vrot.lane.b32.xlu0 %v432, 32
      %v490 = vpop.permute.xlu0 %489
      %491 = vrot.lane.b32.xlu0 %v435, 32
      %v492 = vpop.permute.xlu0 %491
      %493 = vrot.lane.b32.xlu0 %v438, 32
      %v494 = vpop.permute.xlu0 %493
      %503 = vrot.lane.b32.xlu0 %v355, 48
      %v504 = vpop.permute.xlu0 %503
      %505 = vrot.lane.b32.xlu0 %v357, 48
      %v506 = vpop.permute.xlu0 %505
      %507 = vrot.lane.b32.xlu0 %v359, 48
      %v508 = vpop.permute.xlu0 %507
      %509 = vrot.lane.b32.xlu0 %v361, 48
      %v510 = vpop.permute.xlu0 %509
      %511 = vrot.lane.b32.xlu0 %v363, 48
      %v512 = vpop.permute.xlu0 %511
      %513 = vrot.lane.b32.xlu0 %v365, 48
      %v514 = vpop.permute.xlu0 %513
      %515 = vrot.lane.b32.xlu0 %v367, 48
      %v516 = vpop.permute.xlu0 %515
      %517 = vrot.lane.b32.xlu0 %v369, 48
      %v518 = vpop.permute.xlu0 %517
      %527 = vrot.lane.b32.xlu0 %v395, 64
      %v528 = vpop.permute.xlu0 %527
      %529 = vrot.lane.b32.xlu0 %v398, 64
      %v530 = vpop.permute.xlu0 %529
      %531 = vrot.lane.b32.xlu0 %v401, 64
      %v532 = vpop.permute.xlu0 %531
      %533 = vrot.lane.b32.xlu0 %v404, 64
      %v534 = vpop.permute.xlu0 %533
      %535 = vrot.lane.b32.xlu0 %v407, 64
      %v536 = vpop.permute.xlu0 %535
      %537 = vrot.lane.b32.xlu0 %v410, 64
      %v538 = vpop.permute.xlu0 %537
      %539 = vrot.lane.b32.xlu0 %v413, 64
      %v540 = vpop.permute.xlu0 %539
      %541 = vrot.lane.b32.xlu0 %v443, 64
      %v542 = vpop.permute.xlu0 %541
      %551 = vrot.lane.b32.xlu0 %v420, 80
      %v552 = vpop.permute.xlu0 %551
      %553 = vrot.lane.b32.xlu0 %v423, 80
      %v554 = vpop.permute.xlu0 %553
      %555 = vrot.lane.b32.xlu0 %v426, 80
      %v556 = vpop.permute.xlu0 %555
      %557 = vrot.lane.b32.xlu0 %v429, 80
      %v558 = vpop.permute.xlu0 %557
      %559 = vrot.lane.b32.xlu0 %v432, 80
      %v560 = vpop.permute.xlu0 %559
      %561 = vrot.lane.b32.xlu0 %v435, 80
      %v562 = vpop.permute.xlu0 %561
      %563 = vrot.lane.b32.xlu0 %v438, 80
      %v564 = vpop.permute.xlu0 %563
      %565 = vrot.lane.b32.xlu0 %v446, 80
      %v566 = vpop.permute.xlu0 %565
      %575 = vrot.lane.b32.xlu0 %v357, 96
      %v576 = vpop.permute.xlu0 %575
      %577 = vrot.lane.b32.xlu0 %v359, 96
      %v578 = vpop.permute.xlu0 %577
      %579 = vrot.lane.b32.xlu0 %v361, 96
      %v580 = vpop.permute.xlu0 %579
      %581 = vrot.lane.b32.xlu0 %v363, 96
      %v582 = vpop.permute.xlu0 %581
      %583 = vrot.lane.b32.xlu0 %v365, 96
      %v584 = vpop.permute.xlu0 %583
      %585 = vrot.lane.b32.xlu0 %v367, 96
      %v586 = vpop.permute.xlu0 %585
      %587 = vrot.lane.b32.xlu0 %v369, 96
      %v588 = vpop.permute.xlu0 %587
      %589 = vrot.lane.b32.xlu0 %v371, 96
      %v590 = vpop.permute.xlu0 %589
      %599 = vrot.lane.b32.xlu0 %v398, 112
      %v600 = vpop.permute.xlu0 %599
      %601 = vrot.lane.b32.xlu0 %v401, 112
      %v602 = vpop.permute.xlu0 %601
      %603 = vrot.lane.b32.xlu0 %v404, 112
      %v604 = vpop.permute.xlu0 %603
      %605 = vrot.lane.b32.xlu0 %v407, 112
      %v606 = vpop.permute.xlu0 %605
      %607 = vrot.lane.b32.xlu0 %v410, 112
      %v608 = vpop.permute.xlu0 %607
      %609 = vrot.lane.b32.xlu0 %v413, 112
      %v610 = vpop.permute.xlu0 %609
      %611 = vrot.lane.b32.xlu0 %v443, 112
      %v612 = vpop.permute.xlu0 %611
      %613 = vrot.lane.b32.xlu0 %v451, 112
      %v614 = vpop.permute.xlu0 %613
      %vm623 = vcmask 130048
      %v624 = vsel %vm623, %v353, %v456
      %v625 = vsel %vm623, %v355, %v458
      %v626 = vsel %vm623, %v357, %v460
      %v627 = vsel %vm623, %v359, %v462
      %v628 = vsel %vm623, %v361, %v464
      %v629 = vsel %vm623, %v363, %v466
      %v630 = vsel %vm623, %v365, %v468
      %v631 = vsel %vm623, %v367, %v470
      %vm632 = vcmask 261120
      %v633 = vsel %vm632, %v624, %v480
      %v634 = vsel %vm632, %v625, %v482
      %v635 = vsel %vm632, %v626, %v484
      %v636 = vsel %vm632, %v627, %v486
      %v637 = vsel %vm632, %v628, %v488
      %v638 = vsel %vm632, %v629, %v490
      %v639 = vsel %vm632, %v630, %v492
      %v640 = vsel %vm632, %v631, %v494
      %vm641 = vcmask 392192
      %v642 = vsel %vm641, %v633, %v504
      %v643 = vsel %vm641, %v634, %v506
      %v644 = vsel %vm641, %v635, %v508
      %v645 = vsel %vm641, %v636, %v510
      %v646 = vsel %vm641, %v637, %v512
      %v647 = vsel %vm641, %v638, %v514
      %v648 = vsel %vm641, %v639, %v516
      %v649 = vsel %vm641, %v640, %v518
      %vm650 = vcmask 523264
      %v651 = vsel %vm650, %v642, %v528
      %v652 = vsel %vm650, %v643, %v530
      %v653 = vsel %vm650, %v644, %v532
      %v654 = vsel %vm650, %v645, %v534
      %v655 = vsel %vm650, %v646, %v536
      %v656 = vsel %vm650, %v647, %v538
      %v657 = vsel %vm650, %v648, %v540
      %v658 = vsel %vm650, %v649, %v542
      %vm659 = vcmask 654336
      %v660 = vsel %vm659, %v651, %v552
      %v661 = vsel %vm659, %v652, %v554
      %v662 = vsel %vm659, %v653, %v556
      %v663 = vsel %vm659, %v654, %v558
      %v664 = vsel %vm659, %v655, %v560
      %v665 = vsel %vm659, %v656, %v562
      %v666 = vsel %vm659, %v657, %v564
      %v667 = vsel %vm659, %v658, %v566
      %vm668 = vcmask 785408
      %v669 = vsel %vm668, %v660, %v576
      %v670 = vsel %vm668, %v661, %v578
      %v671 = vsel %vm668, %v662, %v580
      %v672 = vsel %vm668, %v663, %v582
      %v673 = vsel %vm668, %v664, %v584
      %v674 = vsel %vm668, %v665, %v586
      %v675 = vsel %vm668, %v666, %v588
      %v676 = vsel %vm668, %v667, %v590
      %vm677 = vcmask 916480
      %v678 = vsel %vm677, %v669, %v600
      %v679 = vsel %vm677, %v670, %v602
      %v680 = vsel %vm677, %v671, %v604
      %v681 = vsel %vm677, %v672, %v606
      %v682 = vsel %vm677, %v673, %v608
      %v683 = vsel %vm677, %v674, %v610
      %v684 = vsel %vm677, %v675, %v612
      %v685 = vsel %vm677, %v676, %v614
      %v686 = vld [vmem:[%s2] sm:$0xff]
      %v687 = vld [vmem:[%s2 + $0x8] sm:$0xff]
      %v688 = vld [vmem:[%s2 + $0x10] sm:$0xff]
      %v689 = vld [vmem:[%s2 + $0x18] sm:$0xff]
      %v690 = vld [vmem:[%s2 + $0x20] sm:$0xff]
      %v691 = vld [vmem:[%s2 + $0x28] sm:$0xff]
      %v692 = vld [vmem:[%s2 + $0x30] sm:$0xff]
      %v693 = vld [vmem:[%s2 + $0x38] sm:$0xff]
      %v694 = vld [vmem:[%s2 + $0x40] sm:$0xff]
      %v695 = vld [vmem:[%s2 + $0x48] sm:$0xff]
      %v696 = vld [vmem:[%s2 + $0x50] sm:$0xff]
      %v697 = vld [vmem:[%s2 + $0x58] sm:$0xff]
      %v698 = vld [vmem:[%s2 + $0x60] sm:$0xff]
      %v699 = vld [vmem:[%s2 + $0x68] sm:$0xff]
      %v700 = vld [vmem:[%s2 + $0x70] sm:$0xff]
      %v701 = vld [vmem:[%s2 + $0x78] sm:$0xff]
      %v702 = vld [vmem:[%s2 + $0x80] sm:$0xff]
      %v703 = vld [vmem:[%s2 + $0x88] sm:$0xff]
      %v704 = vld [vmem:[%s3] sm:$0x1]
      %v706 = vlaneseq
      %v707 = vshrl.u32 %v706, 7
      %v708 = vsub.s32 0, %v707
      %v709 = vrot.slane %v704, %v708
      %v711 = vsel %vm623, %v423, 0
      %v713 = vsel %vm623, %v426, 0
      %v715 = vsel %vm623, %v429, 0
      %v717 = vsel %vm623, %v432, 0
      %v719 = vsel %vm623, %v435, 0
      %v721 = vsel %vm623, %v438, 0
      %v723 = vsel %vm623, %v446, 0
      %v725 = vsel %vm623, %v454, 0
      %727 = vmatprep.subr.mxu0 0.0
      %728 = vmatpush1.msra.mxu0 %v686
      %729 = vmatprep.subr.mxu0 0.0
      %730 = vmatpush1.msra.mxu0 %v687
      %731 = vmatprep.subr.mxu0 0.0
      %732 = vmatpush1.msra.mxu0 %v688
      %733 = vmatprep.subr.mxu0 0.0
      %734 = vmatpush1.msra.mxu0 %v689
      %735 = vmatprep.subr.mxu0 0.0
      %736 = vmatpush1.msra.mxu0 %v690
      %737 = vmatprep.subr.mxu0 0.0
      %738 = vmatpush1.msra.mxu0 %v691
      %739 = vmatprep.subr.mxu0 0.0
      %740 = vmatpush1.msra.mxu0 %v692
      %741 = vmatprep.subr.mxu0 0.0
      %742 = vmatpush1.msra.mxu0 %v693
      %743 = vmatprep.subr.mxu0 0.0
      %744 = vmatpush1.msra.mxu0 %v694
      %745 = vmatprep.subr.mxu0 0.0
      %746 = vmatpush1.msra.mxu0 %v695
      %747 = vmatprep.subr.mxu0 0.0
      %748 = vmatpush1.msra.mxu0 %v696
      %749 = vmatprep.subr.mxu0 0.0
      %750 = vmatpush1.msra.mxu0 %v697
      %751 = vmatprep.subr.mxu0 0.0
      %752 = vmatpush1.msra.mxu0 %v698
      %753 = vmatprep.subr.mxu0 0.0
      %754 = vmatpush1.msra.mxu0 %v699
      %755 = vmatprep.subr.mxu0 0.0
      %756 = vmatpush1.msra.mxu0 %v700
      %757 = vmatprep.subr.mxu0 0.0
      %758 = vmatpush1.msra.mxu0 %v701
      %759 = vmatprep.subr.mxu0 0.0
      %760 = vmatpush1.msra.mxu0 %v702
      %761 = vmatprep.subr.mxu0 0.0
      %762 = vmatpush1.msra.mxu0 %v703
      %763 = vmatprep.subr.mxu0 0.0
      %764 = vmatpush1.msra.mxu0 0.0
      %765 = vmatprep.subr.mxu0 0.0
      %766 = vmatpush1.msra.mxu0 0.0
      %767 = vmatprep.subr.mxu0 0.0
      %768 = vmatpush1.msra.mxu0 0.0
      %769 = vmatprep.subr.mxu0 0.0
      %770 = vmatpush1.msra.mxu0 0.0
      %771 = vmatprep.subr.mxu0 0.0
      %772 = vmatpush1.msra.mxu0 0.0
      %773 = vmatprep.subr.mxu0 0.0
      %774 = vmatpush1.msra.mxu0 0.0
      %775 = vmatprep.subr.mxu0 0.0
      %776 = vmatpush1.msra.mxu0 0.0
      %777 = vmatprep.subr.mxu0 0.0
      %778 = vmatpush1.msra.mxu0 0.0
      %779 = vmatprep.subr.mxu0 0.0
      %780 = vmatpush1.msra.mxu0 0.0
      %781 = vmatprep.subr.mxu0 0.0
      %782 = vmatpush1.msra.mxu0 0.0
      %783 = vmatprep.subr.mxu0 0.0
      %784 = vmatpush1.msra.mxu0 0.0
      %785 = vmatprep.subr.mxu0 0.0
      %786 = vmatpush1.msra.mxu0 0.0
      %787 = vmatprep.subr.mxu0 0.0
      %788 = vmatpush1.msra.mxu0 0.0
      %789 = vmatprep.subr.mxu0 0.0
      %790 = vmatpush1.msra.mxu0 0.0
      %791 = vmatprep.mubr.f32.mxu0 %v711
      %792 = vmatmul.mubr.f32.gmra.mrb[0].mxu0 %v678
      %v793 = vpop.f32.mrb[0].mxu0
      %v794 = vadd.f32 %v709, %v793
      %v795 = vpop.f32.mrb[0].mxu0
      %796 = vmatprep.mubr.f32.mxu0 %v713
      %797 = vmatmul.mubr.f32.gmra.mrb[0].mxu0 %v679
      %v798 = vpop.f32.mrb[0].mxu0
      %v799 = vadd.f32 %v709, %v798
      %v800 = vpop.f32.mrb[0].mxu0
      %801 = vmatprep.mubr.f32.mxu0 %v715
      %802 = vmatmul.mubr.f32.gmra.mrb[0].mxu0 %v680
      %v803 = vpop.f32.mrb[0].mxu0
      %v804 = vadd.f32 %v709, %v803
      %v805 = vpop.f32.mrb[0].mxu0
      %806 = vmatprep.mubr.f32.mxu0 %v717
      %807 = vmatmul.mubr.f32.gmra.mrb[0].mxu0 %v681
      %v808 = vpop.f32.mrb[0].mxu0
      %v809 = vadd.f32 %v709, %v808
      %v810 = vpop.f32.mrb[0].mxu0
      %811 = vmatprep.mubr.f32.mxu0 %v719
      %812 = vmatmul.mubr.f32.gmra.mrb[0].mxu0 %v682
      %v813 = vpop.f32.mrb[0].mxu0
      %v814 = vadd.f32 %v709, %v813
      %v815 = vpop.f32.mrb[0].mxu0
      %816 = vmatprep.mubr.f32.mxu0 %v721
      %817 = vmatmul.mubr.f32.gmra.mrb[0].mxu0 %v683
      %v818 = vpop.f32.mrb[0].mxu0
      %v819 = vadd.f32 %v709, %v818
      %v820 = vpop.f32.mrb[0].mxu0
      %821 = vmatprep.mubr.f32.mxu0 %v723
      %822 = vmatmul.mubr.f32.gmra.mrb[0].mxu0 %v684
      %v823 = vpop.f32.mrb[0].mxu0
      %v824 = vadd.f32 %v709, %v823
      %v825 = vpop.f32.mrb[0].mxu0
      %826 = vmatprep.mubr.f32.mxu0 %v725
      %827 = vmatmul.mubr.f32.gmra.mrb[0].mxu0 %v685
      %v828 = vpop.f32.mrb[0].mxu0
      %v829 = vadd.f32 %v709, %v828
      %v830 = vpop.f32.mrb[0].mxu0
      %831 = vdwg.mxu0
      %832 = vst.msk [vmem:[#allocation2] sm:$0xff] %vm632, 0.0
      %vm833 = vcmask 254976
      %834 = vst.msk [vmem:[#allocation2 + $0x8] sm:$0x3] %vm833, 0.0
      %835 = vst.msk [vmem:[#allocation2 + $0x10] sm:$0xff] %vm632, 0.0
      %836 = vst.msk [vmem:[#allocation2 + $0x18] sm:$0x3] %vm833, 0.0
      %837 = vst.msk [vmem:[#allocation2 + $0x20] sm:$0xff] %vm632, 0.0
      %838 = vst.msk [vmem:[#allocation2 + $0x28] sm:$0x3] %vm833, 0.0
      %839 = vst.msk [vmem:[#allocation2 + $0x30] sm:$0xff] %vm632, 0.0
      %840 = vst.msk [vmem:[#allocation2 + $0x38] sm:$0x3] %vm833, 0.0
      %841 = vst.msk [vmem:[#allocation2 + $0x40] sm:$0xff] %vm632, 0.0
      %842 = vst.msk [vmem:[#allocation2 + $0x48] sm:$0x3] %vm833, 0.0
      %843 = vst.msk [vmem:[#allocation2 + $0x50] sm:$0xff] %vm632, 0.0
      %844 = vst.msk [vmem:[#allocation2 + $0x58] sm:$0x3] %vm833, 0.0
      %845 = vst.msk [vmem:[#allocation2 + $0x60] sm:$0xff] %vm632, 0.0
      %846 = vst.msk [vmem:[#allocation2 + $0x68] sm:$0x3] %vm833, 0.0
      %847 = vst.msk [vmem:[#allocation2 + $0x70] sm:$0xff] %vm632, 0.0
      %848 = vst.msk [vmem:[#allocation2 + $0x78] sm:$0x3] %vm833, 0.0
      %849 = vst.msk [vmem:[#allocation2 + $0x80] sm:$0xff] %vm632, 0.0
      %850 = vst.msk [vmem:[#allocation2 + $0x88] sm:$0x3] %vm833, 0.0
      %851 = vst.msk [vmem:[#allocation2 + $0x90] sm:$0xff] %vm632, 0.0
      %852 = vst.msk [vmem:[#allocation2 + $0x98] sm:$0x3] %vm833, 0.0
      %s853 = scalar_lea.vmem [#allocation2], 16
      %854 = vst.msk [vmem:[%s853 + $0x1] sm:$0xff] %vm632, %v794
      %855 = vst.msk [vmem:[%s853 + $0x11] sm:$0xff] %vm632, %v799
      %856 = vst.msk [vmem:[%s853 + $0x21] sm:$0xff] %vm632, %v804
      %857 = vst.msk [vmem:[%s853 + $0x31] sm:$0xff] %vm632, %v809
      %858 = vst.msk [vmem:[%s853 + $0x41] sm:$0xff] %vm632, %v814
      %859 = vst.msk [vmem:[%s853 + $0x51] sm:$0xff] %vm632, %v819
      %860 = vst.msk [vmem:[%s853 + $0x61] sm:$0xff] %vm632, %v824
      %861 = vst.msk [vmem:[%s853 + $0x71] sm:$0xff] %vm632, %v829
      %v862 = vld [vmem:[#allocation2] sm:$0xff]
      %v863 = vld [vmem:[#allocation2 + $0x8] sm:$0x3]
      %v864 = vld [vmem:[#allocation2 + $0x10] sm:$0xff]
      %v865 = vld [vmem:[#allocation2 + $0x18] sm:$0x3]
      %v866 = vld [vmem:[#allocation2 + $0x20] sm:$0xff]
      %v867 = vld [vmem:[#allocation2 + $0x28] sm:$0x3]
      %v868 = vld [vmem:[#allocation2 + $0x30] sm:$0xff]
      %v869 = vld [vmem:[#allocation2 + $0x38] sm:$0x3]
      %v870 = vld [vmem:[#allocation2 + $0x40] sm:$0xff]
      %v871 = vld [vmem:[#allocation2 + $0x48] sm:$0x3]
      %v872 = vld [vmem:[#allocation2 + $0x50] sm:$0xff]
      %v873 = vld [vmem:[#allocation2 + $0x58] sm:$0x3]
      %v874 = vld [vmem:[#allocation2 + $0x60] sm:$0xff]
      %v875 = vld [vmem:[#allocation2 + $0x68] sm:$0x3]
      %v876 = vld [vmem:[#allocation2 + $0x70] sm:$0xff]
      %v877 = vld [vmem:[#allocation2 + $0x78] sm:$0x3]
      %v878 = vld [vmem:[#allocation2 + $0x80] sm:$0xff]
      %v879 = vld [vmem:[#allocation2 + $0x88] sm:$0x3]
      %v880 = vld [vmem:[#allocation2 + $0x90] sm:$0xff]
      %v881 = vld [vmem:[#allocation2 + $0x98] sm:$0x3]
      %v898 = vrot.slane %v862, 1
      %v899 = vrot.slane %v863, 1
      %v900 = vsel %vm389, %v898, %v899
      %v901 = vrot.slane %v864, 1
      %v902 = vrot.slane %v865, 1
      %v903 = vsel %vm389, %v901, %v902
      %v904 = vrot.slane %v866, 1
      %v905 = vrot.slane %v867, 1
      %v906 = vsel %vm389, %v904, %v905
      %v907 = vrot.slane %v868, 1
      %v908 = vrot.slane %v869, 1
      %v909 = vsel %vm389, %v907, %v908
      %v910 = vrot.slane %v870, 1
      %v911 = vrot.slane %v871, 1
      %v912 = vsel %vm389, %v910, %v911
      %v913 = vrot.slane %v872, 1
      %v914 = vrot.slane %v873, 1
      %v915 = vsel %vm389, %v913, %v914
      %v916 = vrot.slane %v874, 1
      %v917 = vrot.slane %v875, 1
      %v918 = vsel %vm389, %v916, %v917
      %v919 = vrot.slane %v876, 1
      %v920 = vrot.slane %v877, 1
      %v921 = vsel %vm389, %v919, %v920
      %v922 = vrot.slane %v862, 2
      %v923 = vrot.slane %v863, 2
      %v924 = vsel %vm414, %v922, %v923
      %v925 = vrot.slane %v864, 2
      %v926 = vrot.slane %v865, 2
      %v927 = vsel %vm414, %v925, %v926
      %v928 = vrot.slane %v866, 2
      %v929 = vrot.slane %v867, 2
      %v930 = vsel %vm414, %v928, %v929
      %v931 = vrot.slane %v868, 2
      %v932 = vrot.slane %v869, 2
      %v933 = vsel %vm414, %v931, %v932
      %v934 = vrot.slane %v870, 2
      %v935 = vrot.slane %v871, 2
      %v936 = vsel %vm414, %v934, %v935
      %v937 = vrot.slane %v872, 2
      %v938 = vrot.slane %v873, 2
      %v939 = vsel %vm414, %v937, %v938
      %v940 = vrot.slane %v874, 2
      %v941 = vrot.slane %v875, 2
      %v942 = vsel %vm414, %v940, %v941
      %v943 = vrot.slane %v876, 2
      %v944 = vrot.slane %v877, 2
      %v945 = vsel %vm414, %v943, %v944
      %v948 = vrot.slane %v878, 1
      %v949 = vrot.slane %v879, 1
      %v950 = vsel %vm389, %v948, %v949
      %v959 = vrot.slane %v878, 2
      %v960 = vrot.slane %v879, 2
      %v961 = vsel %vm414, %v959, %v960
      %v964 = vrot.slane %v880, 1
      %v965 = vrot.slane %v881, 1
      %v966 = vsel %vm389, %v964, %v965
      %v967 = vrot.slane %v880, 2
      %v968 = vrot.slane %v881, 2
      %v969 = vsel %vm414, %v967, %v968
      %970 = vrot.lane.b32.xlu0 %v900, 32
      %v971 = vpop.permute.xlu0 %970
      %972 = vrot.lane.b32.xlu0 %v903, 32
      %v973 = vpop.permute.xlu0 %972
      %974 = vrot.lane.b32.xlu0 %v906, 32
      %v975 = vpop.permute.xlu0 %974
      %976 = vrot.lane.b32.xlu0 %v909, 32
      %v977 = vpop.permute.xlu0 %976
      %978 = vrot.lane.b32.xlu0 %v912, 32
      %v979 = vpop.permute.xlu0 %978
      %980 = vrot.lane.b32.xlu0 %v915, 32
      %v981 = vpop.permute.xlu0 %980
      %982 = vrot.lane.b32.xlu0 %v918, 32
      %v983 = vpop.permute.xlu0 %982
      %984 = vrot.lane.b32.xlu0 %v921, 32
      %v985 = vpop.permute.xlu0 %984
      %994 = vrot.lane.b32.xlu0 %v924, 64
      %v995 = vpop.permute.xlu0 %994
      %996 = vrot.lane.b32.xlu0 %v927, 64
      %v997 = vpop.permute.xlu0 %996
      %998 = vrot.lane.b32.xlu0 %v930, 64
      %v999 = vpop.permute.xlu0 %998
      %1000 = vrot.lane.b32.xlu0 %v933, 64
      %v1001 = vpop.permute.xlu0 %1000
      %1002 = vrot.lane.b32.xlu0 %v936, 64
      %v1003 = vpop.permute.xlu0 %1002
      %1004 = vrot.lane.b32.xlu0 %v939, 64
      %v1005 = vpop.permute.xlu0 %1004
      %1006 = vrot.lane.b32.xlu0 %v942, 64
      %v1007 = vpop.permute.xlu0 %1006
      %1008 = vrot.lane.b32.xlu0 %v945, 64
      %v1009 = vpop.permute.xlu0 %1008
      %1018 = vrot.lane.b32.xlu0 %v864, 96
      %v1019 = vpop.permute.xlu0 %1018
      %1020 = vrot.lane.b32.xlu0 %v866, 96
      %v1021 = vpop.permute.xlu0 %1020
      %1022 = vrot.lane.b32.xlu0 %v868, 96
      %v1023 = vpop.permute.xlu0 %1022
      %1024 = vrot.lane.b32.xlu0 %v870, 96
      %v1025 = vpop.permute.xlu0 %1024
      %1026 = vrot.lane.b32.xlu0 %v872, 96
      %v1027 = vpop.permute.xlu0 %1026
      %1028 = vrot.lane.b32.xlu0 %v874, 96
      %v1029 = vpop.permute.xlu0 %1028
      %1030 = vrot.lane.b32.xlu0 %v876, 96
      %v1031 = vpop.permute.xlu0 %1030
      %1032 = vrot.lane.b32.xlu0 %v878, 96
      %v1033 = vpop.permute.xlu0 %1032
      %1042 = vrot.lane.b32.xlu0 %v927, 32
      %v1043 = vpop.permute.xlu0 %1042
      %1044 = vrot.lane.b32.xlu0 %v930, 32
      %v1045 = vpop.permute.xlu0 %1044
      %1046 = vrot.lane.b32.xlu0 %v933, 32
      %v1047 = vpop.permute.xlu0 %1046
      %1048 = vrot.lane.b32.xlu0 %v936, 32
      %v1049 = vpop.permute.xlu0 %1048
      %1050 = vrot.lane.b32.xlu0 %v939, 32
      %v1051 = vpop.permute.xlu0 %1050
      %1052 = vrot.lane.b32.xlu0 %v942, 32
      %v1053 = vpop.permute.xlu0 %1052
      %1054 = vrot.lane.b32.xlu0 %v945, 32
      %v1055 = vpop.permute.xlu0 %1054
      %1056 = vrot.lane.b32.xlu0 %v961, 32
      %v1057 = vpop.permute.xlu0 %1056
      %1066 = vrot.lane.b32.xlu0 %v866, 64
      %v1067 = vpop.permute.xlu0 %1066
      %1068 = vrot.lane.b32.xlu0 %v868, 64
      %v1069 = vpop.permute.xlu0 %1068
      %1070 = vrot.lane.b32.xlu0 %v870, 64
      %v1071 = vpop.permute.xlu0 %1070
      %1072 = vrot.lane.b32.xlu0 %v872, 64
      %v1073 = vpop.permute.xlu0 %1072
      %1074 = vrot.lane.b32.xlu0 %v874, 64
      %v1075 = vpop.permute.xlu0 %1074
      %1076 = vrot.lane.b32.xlu0 %v876, 64
      %v1077 = vpop.permute.xlu0 %1076
      %1078 = vrot.lane.b32.xlu0 %v878, 64
      %v1079 = vpop.permute.xlu0 %1078
      %1080 = vrot.lane.b32.xlu0 %v880, 64
      %v1081 = vpop.permute.xlu0 %1080
      %1090 = vrot.lane.b32.xlu0 %v906, 96
      %v1091 = vpop.permute.xlu0 %1090
      %1092 = vrot.lane.b32.xlu0 %v909, 96
      %v1093 = vpop.permute.xlu0 %1092
      %1094 = vrot.lane.b32.xlu0 %v912, 96
      %v1095 = vpop.permute.xlu0 %1094
      %1096 = vrot.lane.b32.xlu0 %v915, 96
      %v1097 = vpop.permute.xlu0 %1096
      %1098 = vrot.lane.b32.xlu0 %v918, 96
      %v1099 = vpop.permute.xlu0 %1098
      %1100 = vrot.lane.b32.xlu0 %v921, 96
      %v1101 = vpop.permute.xlu0 %1100
      %1102 = vrot.lane.b32.xlu0 %v950, 96
      %v1103 = vpop.permute.xlu0 %1102
      %1104 = vrot.lane.b32.xlu0 %v966, 96
      %v1105 = vpop.permute.xlu0 %1104
      %v1114 = vsel %vm632, %v862, %v971
      %v1115 = vsel %vm632, %v864, %v973
      %v1116 = vsel %vm632, %v866, %v975
      %v1117 = vsel %vm632, %v868, %v977
      %v1118 = vsel %vm632, %v870, %v979
      %v1119 = vsel %vm632, %v872, %v981
      %v1120 = vsel %vm632, %v874, %v983
      %v1121 = vsel %vm632, %v876, %v985
      %v1122 = vsel %vm650, %v1114, %v995
      %v1123 = vsel %vm650, %v1115, %v997
      %v1124 = vsel %vm650, %v1116, %v999
      %v1125 = vsel %vm650, %v1117, %v1001
      %v1126 = vsel %vm650, %v1118, %v1003
      %v1127 = vsel %vm650, %v1119, %v1005
      %v1128 = vsel %vm650, %v1120, %v1007
      %v1129 = vsel %vm650, %v1121, %v1009
      %v1130 = vsel %vm668, %v1122, %v1019
      %v1131 = vsel %vm668, %v1123, %v1021
      %v1132 = vsel %vm668, %v1124, %v1023
      %v1133 = vsel %vm668, %v1125, %v1025
      %v1134 = vsel %vm668, %v1126, %v1027
      %v1135 = vsel %vm668, %v1127, %v1029
      %v1136 = vsel %vm668, %v1128, %v1031
      %v1137 = vsel %vm668, %v1129, %v1033
      %v1138 = vsel %vm632, %v903, %v1043
      %v1139 = vsel %vm632, %v906, %v1045
      %v1140 = vsel %vm632, %v909, %v1047
      %v1141 = vsel %vm632, %v912, %v1049
      %v1142 = vsel %vm632, %v915, %v1051
      %v1143 = vsel %vm632, %v918, %v1053
      %v1144 = vsel %vm632, %v921, %v1055
      %v1145 = vsel %vm632, %v950, %v1057
      %v1146 = vsel %vm650, %v1138, %v1067
      %v1147 = vsel %vm650, %v1139, %v1069
      %v1148 = vsel %vm650, %v1140, %v1071
      %v1149 = vsel %vm650, %v1141, %v1073
      %v1150 = vsel %vm650, %v1142, %v1075
      %v1151 = vsel %vm650, %v1143, %v1077
      %v1152 = vsel %vm650, %v1144, %v1079
      %v1153 = vsel %vm650, %v1145, %v1081
      %v1154 = vsel %vm668, %v1146, %v1091
      %v1155 = vsel %vm668, %v1147, %v1093
      %v1156 = vsel %vm668, %v1148, %v1095
      %v1157 = vsel %vm668, %v1149, %v1097
      %v1158 = vsel %vm668, %v1150, %v1099
      %v1159 = vsel %vm668, %v1151, %v1101
      %v1160 = vsel %vm668, %v1152, %v1103
      %v1161 = vsel %vm668, %v1153, %v1105
      %v1162 = vld [vmem:[%s347] sm:$0xff]
      %v1163 = vld [vmem:[%s347 + $0x8] sm:$0x3]
      %v1164 = vld [vmem:[%s347 + $0x10] sm:$0xff]
      %v1165 = vld [vmem:[%s347 + $0x18] sm:$0x3]
      %v1166 = vld [vmem:[%s347 + $0x20] sm:$0xff]
      %v1167 = vld [vmem:[%s347 + $0x28] sm:$0x3]
      %v1168 = vld [vmem:[%s347 + $0x30] sm:$0xff]
      %v1169 = vld [vmem:[%s347 + $0x38] sm:$0x3]
      %v1170 = vld [vmem:[%s347 + $0x40] sm:$0xff]
      %v1171 = vld [vmem:[%s347 + $0x48] sm:$0x3]
      %v1172 = vld [vmem:[%s347 + $0x50] sm:$0xff]
      %v1173 = vld [vmem:[%s347 + $0x58] sm:$0x3]
      %v1174 = vld [vmem:[%s347 + $0x60] sm:$0xff]
      %v1175 = vld [vmem:[%s347 + $0x68] sm:$0x3]
      %v1176 = vld [vmem:[%s347 + $0x70] sm:$0xff]
      %v1177 = vld [vmem:[%s347 + $0x78] sm:$0x3]
      %v1178 = vld [vmem:[%s347 + $0x80] sm:$0xff]
      %v1179 = vld [vmem:[%s347 + $0x88] sm:$0x3]
      %v1180 = vld [vmem:[%s347 + $0x90] sm:$0xff]
      %v1181 = vld [vmem:[%s347 + $0x98] sm:$0x3]
      %v1198 = vrot.slane %v1162, 1
      %v1199 = vrot.slane %v1163, 1
      %v1200 = vsel %vm389, %v1198, %v1199
      %v1201 = vrot.slane %v1164, 1
      %v1202 = vrot.slane %v1165, 1
      %v1203 = vsel %vm389, %v1201, %v1202
      %v1204 = vrot.slane %v1166, 1
      %v1205 = vrot.slane %v1167, 1
      %v1206 = vsel %vm389, %v1204, %v1205
      %v1207 = vrot.slane %v1168, 1
      %v1208 = vrot.slane %v1169, 1
      %v1209 = vsel %vm389, %v1207, %v1208
      %v1210 = vrot.slane %v1170, 1
      %v1211 = vrot.slane %v1171, 1
      %v1212 = vsel %vm389, %v1210, %v1211
      %v1213 = vrot.slane %v1172, 1
      %v1214 = vrot.slane %v1173, 1
      %v1215 = vsel %vm389, %v1213, %v1214
      %v1216 = vrot.slane %v1174, 1
      %v1217 = vrot.slane %v1175, 1
      %v1218 = vsel %vm389, %v1216, %v1217
      %v1219 = vrot.slane %v1176, 1
      %v1220 = vrot.slane %v1177, 1
      %v1221 = vsel %vm389, %v1219, %v1220
      %v1222 = vrot.slane %v1162, 2
      %v1223 = vrot.slane %v1163, 2
      %v1224 = vsel %vm414, %v1222, %v1223
      %v1225 = vrot.slane %v1164, 2
      %v1226 = vrot.slane %v1165, 2
      %v1227 = vsel %vm414, %v1225, %v1226
      %v1228 = vrot.slane %v1166, 2
      %v1229 = vrot.slane %v1167, 2
      %v1230 = vsel %vm414, %v1228, %v1229
      %v1231 = vrot.slane %v1168, 2
      %v1232 = vrot.slane %v1169, 2
      %v1233 = vsel %vm414, %v1231, %v1232
      %v1234 = vrot.slane %v1170, 2
      %v1235 = vrot.slane %v1171, 2
      %v1236 = vsel %vm414, %v1234, %v1235
      %v1237 = vrot.slane %v1172, 2
      %v1238 = vrot.slane %v1173, 2
      %v1239 = vsel %vm414, %v1237, %v1238
      %v1240 = vrot.slane %v1174, 2
      %v1241 = vrot.slane %v1175, 2
      %v1242 = vsel %vm414, %v1240, %v1241
      %v1243 = vrot.slane %v1176, 2
      %v1244 = vrot.slane %v1177, 2
      %v1245 = vsel %vm414, %v1243, %v1244
      %v1248 = vrot.slane %v1178, 1
      %v1249 = vrot.slane %v1179, 1
      %v1250 = vsel %vm389, %v1248, %v1249
      %v1259 = vrot.slane %v1178, 2
      %v1260 = vrot.slane %v1179, 2
      %v1261 = vsel %vm414, %v1259, %v1260
      %v1264 = vrot.slane %v1180, 1
      %v1265 = vrot.slane %v1181, 1
      %v1266 = vsel %vm389, %v1264, %v1265
      %v1267 = vrot.slane %v1180, 2
      %v1268 = vrot.slane %v1181, 2
      %v1269 = vsel %vm414, %v1267, %v1268
      %1270 = vrot.lane.b32.xlu0 %v1200, 32
      %v1271 = vpop.permute.xlu0 %1270
      %1272 = vrot.lane.b32.xlu0 %v1203, 32
      %v1273 = vpop.permute.xlu0 %1272
      %1274 = vrot.lane.b32.xlu0 %v1206, 32
      %v1275 = vpop.permute.xlu0 %1274
      %1276 = vrot.lane.b32.xlu0 %v1209, 32
      %v1277 = vpop.permute.xlu0 %1276
      %1278 = vrot.lane.b32.xlu0 %v1212, 32
      %v1279 = vpop.permute.xlu0 %1278
      %1280 = vrot.lane.b32.xlu0 %v1215, 32
      %v1281 = vpop.permute.xlu0 %1280
      %1282 = vrot.lane.b32.xlu0 %v1218, 32
      %v1283 = vpop.permute.xlu0 %1282
      %1284 = vrot.lane.b32.xlu0 %v1221, 32
      %v1285 = vpop.permute.xlu0 %1284
      %1294 = vrot.lane.b32.xlu0 %v1224, 64
      %v1295 = vpop.permute.xlu0 %1294
      %1296 = vrot.lane.b32.xlu0 %v1227, 64
      %v1297 = vpop.permute.xlu0 %1296
      %1298 = vrot.lane.b32.xlu0 %v1230, 64
      %v1299 = vpop.permute.xlu0 %1298
      %1300 = vrot.lane.b32.xlu0 %v1233, 64
      %v1301 = vpop.permute.xlu0 %1300
      %1302 = vrot.lane.b32.xlu0 %v1236, 64
      %v1303 = vpop.permute.xlu0 %1302
      %1304 = vrot.lane.b32.xlu0 %v1239, 64
      %v1305 = vpop.permute.xlu0 %1304
      %1306 = vrot.lane.b32.xlu0 %v1242, 64
      %v1307 = vpop.permute.xlu0 %1306
      %1308 = vrot.lane.b32.xlu0 %v1245, 64
      %v1309 = vpop.permute.xlu0 %1308
      %1318 = vrot.lane.b32.xlu0 %v1164, 96
      %v1319 = vpop.permute.xlu0 %1318
      %1320 = vrot.lane.b32.xlu0 %v1166, 96
      %v1321 = vpop.permute.xlu0 %1320
      %1322 = vrot.lane.b32.xlu0 %v1168, 96
      %v1323 = vpop.permute.xlu0 %1322
      %1324 = vrot.lane.b32.xlu0 %v1170, 96
      %v1325 = vpop.permute.xlu0 %1324
      %1326 = vrot.lane.b32.xlu0 %v1172, 96
      %v1327 = vpop.permute.xlu0 %1326
      %1328 = vrot.lane.b32.xlu0 %v1174, 96
      %v1329 = vpop.permute.xlu0 %1328
      %1330 = vrot.lane.b32.xlu0 %v1176, 96
      %v1331 = vpop.permute.xlu0 %1330
      %1332 = vrot.lane.b32.xlu0 %v1178, 96
      %v1333 = vpop.permute.xlu0 %1332
      %1342 = vrot.lane.b32.xlu0 %v1227, 32
      %v1343 = vpop.permute.xlu0 %1342
      %1344 = vrot.lane.b32.xlu0 %v1230, 32
      %v1345 = vpop.permute.xlu0 %1344
      %1346 = vrot.lane.b32.xlu0 %v1233, 32
      %v1347 = vpop.permute.xlu0 %1346
      %1348 = vrot.lane.b32.xlu0 %v1236, 32
      %v1349 = vpop.permute.xlu0 %1348
      %1350 = vrot.lane.b32.xlu0 %v1239, 32
      %v1351 = vpop.permute.xlu0 %1350
      %1352 = vrot.lane.b32.xlu0 %v1242, 32
      %v1353 = vpop.permute.xlu0 %1352
      %1354 = vrot.lane.b32.xlu0 %v1245, 32
      %v1355 = vpop.permute.xlu0 %1354
      %1356 = vrot.lane.b32.xlu0 %v1261, 32
      %v1357 = vpop.permute.xlu0 %1356
      %1366 = vrot.lane.b32.xlu0 %v1166, 64
      %v1367 = vpop.permute.xlu0 %1366
      %1368 = vrot.lane.b32.xlu0 %v1168, 64
      %v1369 = vpop.permute.xlu0 %1368
      %1370 = vrot.lane.b32.xlu0 %v1170, 64
      %v1371 = vpop.permute.xlu0 %1370
      %1372 = vrot.lane.b32.xlu0 %v1172, 64
      %v1373 = vpop.permute.xlu0 %1372
      %1374 = vrot.lane.b32.xlu0 %v1174, 64
      %v1375 = vpop.permute.xlu0 %1374
      %1376 = vrot.lane.b32.xlu0 %v1176, 64
      %v1377 = vpop.permute.xlu0 %1376
      %1378 = vrot.lane.b32.xlu0 %v1178, 64
      %v1379 = vpop.permute.xlu0 %1378
      %1380 = vrot.lane.b32.xlu0 %v1180, 64
      %v1381 = vpop.permute.xlu0 %1380
      %1390 = vrot.lane.b32.xlu0 %v1206, 96
      %v1391 = vpop.permute.xlu0 %1390
      %1392 = vrot.lane.b32.xlu0 %v1209, 96
      %v1393 = vpop.permute.xlu0 %1392
      %1394 = vrot.lane.b32.xlu0 %v1212, 96
      %v1395 = vpop.permute.xlu0 %1394
      %1396 = vrot.lane.b32.xlu0 %v1215, 96
      %v1397 = vpop.permute.xlu0 %1396
      %1398 = vrot.lane.b32.xlu0 %v1218, 96
      %v1399 = vpop.permute.xlu0 %1398
      %1400 = vrot.lane.b32.xlu0 %v1221, 96
      %v1401 = vpop.permute.xlu0 %1400
      %1402 = vrot.lane.b32.xlu0 %v1250, 96
      %v1403 = vpop.permute.xlu0 %1402
      %1404 = vrot.lane.b32.xlu0 %v1266, 96
      %v1405 = vpop.permute.xlu0 %1404
      %v1414 = vsel %vm632, %v1162, %v1271
      %v1415 = vsel %vm632, %v1164, %v1273
      %v1416 = vsel %vm632, %v1166, %v1275
      %v1417 = vsel %vm632, %v1168, %v1277
      %v1418 = vsel %vm632, %v1170, %v1279
      %v1419 = vsel %vm632, %v1172, %v1281
      %v1420 = vsel %vm632, %v1174, %v1283
      %v1421 = vsel %vm632, %v1176, %v1285
      %v1422 = vsel %vm650, %v1414, %v1295
      %v1423 = vsel %vm650, %v1415, %v1297
      %v1424 = vsel %vm650, %v1416, %v1299
      %v1425 = vsel %vm650, %v1417, %v1301
      %v1426 = vsel %vm650, %v1418, %v1303
      %v1427 = vsel %vm650, %v1419, %v1305
      %v1428 = vsel %vm650, %v1420, %v1307
      %v1429 = vsel %vm650, %v1421, %v1309
      %v1430 = vsel %vm668, %v1422, %v1319
      %v1431 = vsel %vm668, %v1423, %v1321
      %v1432 = vsel %vm668, %v1424, %v1323
      %v1433 = vsel %vm668, %v1425, %v1325
      %v1434 = vsel %vm668, %v1426, %v1327
      %v1435 = vsel %vm668, %v1427, %v1329
      %v1436 = vsel %vm668, %v1428, %v1331
      %v1437 = vsel %vm668, %v1429, %v1333
      %v1438 = vsel %vm632, %v1203, %v1343
      %v1439 = vsel %vm632, %v1206, %v1345
      %v1440 = vsel %vm632, %v1209, %v1347
      %v1441 = vsel %vm632, %v1212, %v1349
      %v1442 = vsel %vm632, %v1215, %v1351
      %v1443 = vsel %vm632, %v1218, %v1353
      %v1444 = vsel %vm632, %v1221, %v1355
      %v1445 = vsel %vm632, %v1250, %v1357
      %v1446 = vsel %vm650, %v1438, %v1367
      %v1447 = vsel %vm650, %v1439, %v1369
      %v1448 = vsel %vm650, %v1440, %v1371
      %v1449 = vsel %vm650, %v1441, %v1373
      %v1450 = vsel %vm650, %v1442, %v1375
      %v1451 = vsel %vm650, %v1443, %v1377
      %v1452 = vsel %vm650, %v1444, %v1379
      %v1453 = vsel %vm650, %v1445, %v1381
      %v1454 = vsel %vm668, %v1446, %v1391
      %v1455 = vsel %vm668, %v1447, %v1393
      %v1456 = vsel %vm668, %v1448, %v1395
      %v1457 = vsel %vm668, %v1449, %v1397
      %v1458 = vsel %vm668, %v1450, %v1399
      %v1459 = vsel %vm668, %v1451, %v1401
      %v1460 = vsel %vm668, %v1452, %v1403
      %v1461 = vsel %vm668, %v1453, %v1405
      %v1462 = vld [vmem:[%s4] sm:$0xff]
      %v1463 = vld [vmem:[%s4 + $0x8] sm:$0xff]
      %v1464 = vld [vmem:[%s4 + $0x10] sm:$0xff]
      %v1465 = vld [vmem:[%s4 + $0x18] sm:$0xff]
      %v1466 = vld [vmem:[%s4 + $0x20] sm:$0xff]
      %v1467 = vld [vmem:[%s4 + $0x28] sm:$0xff]
      %v1468 = vld [vmem:[%s4 + $0x30] sm:$0xff]
      %v1469 = vld [vmem:[%s4 + $0x38] sm:$0xff]
      %v1470 = vld [vmem:[%s4 + $0x40] sm:$0xff]
      %v1471 = vld [vmem:[%s4 + $0x48] sm:$0xff]
      %v1472 = vld [vmem:[%s4 + $0x50] sm:$0xff]
      %v1473 = vld [vmem:[%s4 + $0x58] sm:$0xff]
      %v1474 = vld [vmem:[%s4 + $0x60] sm:$0xff]
      %v1475 = vld [vmem:[%s4 + $0x68] sm:$0xff]
      %v1476 = vld [vmem:[%s4 + $0x70] sm:$0xff]
      %v1477 = vld [vmem:[%s4 + $0x78] sm:$0xff]
      %v1478 = vld [vmem:[%s4 + $0x80] sm:$0xff]
      %v1479 = vld [vmem:[%s4 + $0x88] sm:$0xff]
      %v1480 = vld [vmem:[%s4 + $0x90] sm:$0xff]
      %v1481 = vld [vmem:[%s4 + $0x98] sm:$0xff]
      %v1482 = vld [vmem:[%s4 + $0xa0] sm:$0xff]
      %v1483 = vld [vmem:[%s4 + $0xa8] sm:$0xff]
      %v1484 = vld [vmem:[%s4 + $0xb0] sm:$0xff]
      %v1485 = vld [vmem:[%s4 + $0xb8] sm:$0xff]
      %v1486 = vld [vmem:[%s4 + $0xc0] sm:$0xff]
      %v1487 = vld [vmem:[%s4 + $0xc8] sm:$0xff]
      %v1488 = vld [vmem:[%s4 + $0xd0] sm:$0xff]
      %v1489 = vld [vmem:[%s4 + $0xd8] sm:$0xff]
      %v1490 = vld [vmem:[%s4 + $0xe0] sm:$0xff]
      %v1491 = vld [vmem:[%s4 + $0xe8] sm:$0xff]
      %v1492 = vld [vmem:[%s4 + $0xf0] sm:$0xff]
      %v1493 = vld [vmem:[%s4 + $0xf8] sm:$0xff]
      %v1494 = vld [vmem:[%s4 + $0x100] sm:$0xff]
      %v1495 = vld [vmem:[%s4 + $0x108] sm:$0xff]
      %v1496 = vld [vmem:[%s4 + $0x110] sm:$0xff]
      %v1497 = vld [vmem:[%s4 + $0x118] sm:$0xff]
      %v1498 = vld [vmem:[%s5] sm:$0xff]
      %v1499 = vld [vmem:[%s5 + $0x8] sm:$0xff]
      %v1500 = vld [vmem:[%s5 + $0x10] sm:$0xff]
      %v1501 = vld [vmem:[%s5 + $0x18] sm:$0xff]
      %v1502 = vld [vmem:[%s5 + $0x20] sm:$0xff]
      %v1503 = vld [vmem:[%s5 + $0x28] sm:$0xff]
      %v1504 = vld [vmem:[%s5 + $0x30] sm:$0xff]
      %v1505 = vld [vmem:[%s5 + $0x38] sm:$0xff]
      %v1506 = vld [vmem:[%s5 + $0x40] sm:$0xff]
      %v1507 = vld [vmem:[%s5 + $0x48] sm:$0xff]
      %v1508 = vld [vmem:[%s5 + $0x50] sm:$0xff]
      %v1509 = vld [vmem:[%s5 + $0x58] sm:$0xff]
      %v1510 = vld [vmem:[%s5 + $0x60] sm:$0xff]
      %v1511 = vld [vmem:[%s5 + $0x68] sm:$0xff]
      %v1512 = vld [vmem:[%s5 + $0x70] sm:$0xff]
      %v1513 = vld [vmem:[%s5 + $0x78] sm:$0xff]
      %v1514 = vld [vmem:[%s5 + $0x80] sm:$0xff]
      %v1515 = vld [vmem:[%s5 + $0x88] sm:$0xff]
      %v1516 = vld [vmem:[%s5 + $0x90] sm:$0xff]
      %v1517 = vld [vmem:[%s5 + $0x98] sm:$0xff]
      %v1518 = vld [vmem:[%s5 + $0xa0] sm:$0xff]
      %v1519 = vld [vmem:[%s5 + $0xa8] sm:$0xff]
      %v1520 = vld [vmem:[%s5 + $0xb0] sm:$0xff]
      %v1521 = vld [vmem:[%s5 + $0xb8] sm:$0xff]
      %v1522 = vld [vmem:[%s5 + $0xc0] sm:$0xff]
      %v1523 = vld [vmem:[%s5 + $0xc8] sm:$0xff]
      %v1524 = vld [vmem:[%s5 + $0xd0] sm:$0xff]
      %v1525 = vld [vmem:[%s5 + $0xd8] sm:$0xff]
      %v1526 = vld [vmem:[%s5 + $0xe0] sm:$0xff]
      %v1527 = vld [vmem:[%s5 + $0xe8] sm:$0xff]
      %v1528 = vld [vmem:[%s5 + $0xf0] sm:$0xff]
      %v1529 = vld [vmem:[%s5 + $0xf8] sm:$0xff]
      %v1530 = vld [vmem:[%s5 + $0x100] sm:$0xff]
      %v1531 = vld [vmem:[%s5 + $0x108] sm:$0xff]
      %v1532 = vld [vmem:[%s5 + $0x110] sm:$0xff]
      %v1533 = vld [vmem:[%s5 + $0x118] sm:$0xff]
      %v1534 = vsel %vm632, %v1230, 0
      %v1536 = vsel %vm632, %v1233, 0
      %v1538 = vsel %vm632, %v1236, 0
      %v1540 = vsel %vm632, %v1239, 0
      %v1542 = vsel %vm632, %v1242, 0
      %v1544 = vsel %vm632, %v1245, 0
      %v1546 = vsel %vm632, %v1261, 0
      %v1548 = vsel %vm632, %v1269, 0
      %1550 = vmatprep.subr.mxu0 0.0
      %1551 = vmatpush1.msra.mxu0 %v1498
      %1552 = vmatprep.subr.mxu0 0.0
      %1553 = vmatpush1.msra.mxu0 %v1499
      %1554 = vmatprep.subr.mxu0 0.0
      %1555 = vmatpush1.msra.mxu0 %v1500
      %1556 = vmatprep.subr.mxu0 0.0
      %1557 = vmatpush1.msra.mxu0 %v1501
      %1558 = vmatprep.subr.mxu0 0.0
      %1559 = vmatpush1.msra.mxu0 %v1502
      %1560 = vmatprep.subr.mxu0 0.0
      %1561 = vmatpush1.msra.mxu0 %v1503
      %1562 = vmatprep.subr.mxu0 0.0
      %1563 = vmatpush1.msra.mxu0 %v1504
      %1564 = vmatprep.subr.mxu0 0.0
      %1565 = vmatpush1.msra.mxu0 %v1505
      %1566 = vmatprep.subr.mxu0 0.0
      %1567 = vmatpush1.msra.mxu0 %v1506
      %1568 = vmatprep.subr.mxu0 0.0
      %1569 = vmatpush1.msra.mxu0 %v1507
      %1570 = vmatprep.subr.mxu0 0.0
      %1571 = vmatpush1.msra.mxu0 %v1508
      %1572 = vmatprep.subr.mxu0 0.0
      %1573 = vmatpush1.msra.mxu0 %v1509
      %1574 = vmatprep.subr.mxu0 0.0
      %1575 = vmatpush1.msra.mxu0 %v1510
      %1576 = vmatprep.subr.mxu0 0.0
      %1577 = vmatpush1.msra.mxu0 %v1511
      %1578 = vmatprep.subr.mxu0 0.0
      %1579 = vmatpush1.msra.mxu0 %v1512
      %1580 = vmatprep.subr.mxu0 0.0
      %1581 = vmatpush1.msra.mxu0 %v1513
      %1582 = vmatprep.subr.mxu0 0.0
      %1583 = vmatpush1.msra.mxu0 %v1514
      %1584 = vmatprep.subr.mxu0 0.0
      %1585 = vmatpush1.msra.mxu0 %v1515
      %1586 = vmatprep.subr.mxu0 0.0
      %1587 = vmatpush1.msra.mxu0 %v1516
      %1588 = vmatprep.subr.mxu0 0.0
      %1589 = vmatpush1.msra.mxu0 %v1517
      %1590 = vmatprep.subr.mxu0 0.0
      %1591 = vmatpush1.msra.mxu0 %v1518
      %1592 = vmatprep.subr.mxu0 0.0
      %1593 = vmatpush1.msra.mxu0 %v1519
      %1594 = vmatprep.subr.mxu0 0.0
      %1595 = vmatpush1.msra.mxu0 %v1520
      %1596 = vmatprep.subr.mxu0 0.0
      %1597 = vmatpush1.msra.mxu0 %v1521
      %1598 = vmatprep.subr.mxu0 0.0
      %1599 = vmatpush1.msra.mxu0 %v1522
      %1600 = vmatprep.subr.mxu0 0.0
      %1601 = vmatpush1.msra.mxu0 %v1523
      %1602 = vmatprep.subr.mxu0 0.0
      %1603 = vmatpush1.msra.mxu0 %v1524
      %1604 = vmatprep.subr.mxu0 0.0
      %1605 = vmatpush1.msra.mxu0 %v1525
      %1606 = vmatprep.subr.mxu0 0.0
      %1607 = vmatpush1.msra.mxu0 %v1526
      %1608 = vmatprep.subr.mxu0 0.0
      %1609 = vmatpush1.msra.mxu0 %v1527
      %1610 = vmatprep.subr.mxu0 0.0
      %1611 = vmatpush1.msra.mxu0 %v1528
      %1612 = vmatprep.subr.mxu0 0.0
      %1613 = vmatpush1.msra.mxu0 %v1529
      %1614 = vmatprep.mubr.f32.mxu0 %v1454
      %1615 = vmatmul.mubr.f32.gmra.mrb[0].mxu0 %v1430
      %v1616 = vpop.f32.mrb[0].mxu0
      %v1617 = vadd.f32 0.0, %v1616
      %v1618 = vpop.f32.mrb[0].mxu0
      %1619 = vmatprep.mubr.f32.mxu0 %v1455
      %1620 = vmatmul.mubr.f32.gmra.mrb[0].mxu0 %v1431
      %v1621 = vpop.f32.mrb[0].mxu0
      %v1622 = vadd.f32 0.0, %v1621
      %v1623 = vpop.f32.mrb[0].mxu0
      %1624 = vmatprep.mubr.f32.mxu0 %v1456
      %1625 = vmatmul.mubr.f32.gmra.mrb[0].mxu0 %v1432
      %v1626 = vpop.f32.mrb[0].mxu0
      %v1627 = vadd.f32 0.0, %v1626
      %v1628 = vpop.f32.mrb[0].mxu0
      %1629 = vmatprep.mubr.f32.mxu0 %v1457
      %1630 = vmatmul.mubr.f32.gmra.mrb[0].mxu0 %v1433
      %v1631 = vpop.f32.mrb[0].mxu0
      %v1632 = vadd.f32 0.0, %v1631
      %v1633 = vpop.f32.mrb[0].mxu0
      %1634 = vmatprep.mubr.f32.mxu0 %v1458
      %1635 = vmatmul.mubr.f32.gmra.mrb[0].mxu0 %v1434
      %v1636 = vpop.f32.mrb[0].mxu0
      %v1637 = vadd.f32 0.0, %v1636
      %v1638 = vpop.f32.mrb[0].mxu0
      %1639 = vmatprep.mubr.f32.mxu0 %v1459
      %1640 = vmatmul.mubr.f32.gmra.mrb[0].mxu0 %v1435
      %v1641 = vpop.f32.mrb[0].mxu0
      %v1642 = vadd.f32 0.0, %v1641
      %v1643 = vpop.f32.mrb[0].mxu0
      %1644 = vmatprep.mubr.f32.mxu0 %v1460
      %1645 = vmatmul.mubr.f32.gmra.mrb[0].mxu0 %v1436
      %v1646 = vpop.f32.mrb[0].mxu0
      %v1647 = vadd.f32 0.0, %v1646
      %v1648 = vpop.f32.mrb[0].mxu0
      %1649 = vmatprep.mubr.f32.mxu0 %v1461
      %1650 = vmatmul.mubr.f32.gmra.mrb[0].mxu0 %v1437
      %v1651 = vpop.f32.mrb[0].mxu0
      %v1652 = vadd.f32 0.0, %v1651
      %v1653 = vpop.f32.mrb[0].mxu0
      %1654 = vdwg.mxu0
      %1655 = vmatprep.subr.mxu0 0.0
      %1656 = vmatpush1.msra.mxu0 %v1530
      %1657 = vmatprep.subr.mxu0 0.0
      %1658 = vmatpush1.msra.mxu0 %v1531
      %1659 = vmatprep.subr.mxu0 0.0
      %1660 = vmatpush1.msra.mxu0 %v1532
      %1661 = vmatprep.subr.mxu0 0.0
      %1662 = vmatpush1.msra.mxu0 %v1533
      %1663 = vmatprep.subr.mxu0 0.0
      %1664 = vmatpush1.msra.mxu0 0.0
      %1665 = vmatprep.subr.mxu0 0.0
      %1666 = vmatpush1.msra.mxu0 0.0
      %1667 = vmatprep.subr.mxu0 0.0
      %1668 = vmatpush1.msra.mxu0 0.0
      %1669 = vmatprep.subr.mxu0 0.0
      %1670 = vmatpush1.msra.mxu0 0.0
      %1671 = vmatprep.subr.mxu0 0.0
      %1672 = vmatpush1.msra.mxu0 0.0
      %1673 = vmatprep.subr.mxu0 0.0
      %1674 = vmatpush1.msra.mxu0 0.0
      %1675 = vmatprep.subr.mxu0 0.0
      %1676 = vmatpush1.msra.mxu0 0.0
      %1677 = vmatprep.subr.mxu0 0.0
      %1678 = vmatpush1.msra.mxu0 0.0
      %1679 = vmatprep.subr.mxu0 0.0
      %1680 = vmatpush1.msra.mxu0 0.0
      %1681 = vmatprep.subr.mxu0 0.0
      %1682 = vmatpush1.msra.mxu0 0.0
      %1683 = vmatprep.subr.mxu0 0.0
      %1684 = vmatpush1.msra.mxu0 0.0
      %1685 = vmatprep.subr.mxu0 0.0
      %1686 = vmatpush1.msra.mxu0 0.0
      %1687 = vmatprep.subr.mxu0 0.0
      %1688 = vmatpush1.msra.mxu0 0.0
      %1689 = vmatprep.subr.mxu0 0.0
      %1690 = vmatpush1.msra.mxu0 0.0
      %1691 = vmatprep.subr.mxu0 0.0
      %1692 = vmatpush1.msra.mxu0 0.0
      %1693 = vmatprep.subr.mxu0 0.0
      %1694 = vmatpush1.msra.mxu0 0.0
      %1695 = vmatprep.subr.mxu0 0.0
      %1696 = vmatpush1.msra.mxu0 0.0
      %1697 = vmatprep.subr.mxu0 0.0
      %1698 = vmatpush1.msra.mxu0 0.0
      %1699 = vmatprep.subr.mxu0 0.0
      %1700 = vmatpush1.msra.mxu0 0.0
      %1701 = vmatprep.subr.mxu0 0.0
      %1702 = vmatpush1.msra.mxu0 0.0
      %1703 = vmatprep.subr.mxu0 0.0
      %1704 = vmatpush1.msra.mxu0 0.0
      %1705 = vmatprep.subr.mxu0 0.0
      %1706 = vmatpush1.msra.mxu0 0.0
      %1707 = vmatprep.subr.mxu0 0.0
      %1708 = vmatpush1.msra.mxu0 0.0
      %1709 = vmatprep.subr.mxu0 0.0
      %1710 = vmatpush1.msra.mxu0 0.0
      %1711 = vmatprep.subr.mxu0 0.0
      %1712 = vmatpush1.msra.mxu0 0.0
      %1713 = vmatprep.subr.mxu0 0.0
      %1714 = vmatpush1.msra.mxu0 0.0
      %1715 = vmatprep.subr.mxu0 0.0
      %1716 = vmatpush1.msra.mxu0 0.0
      %1717 = vmatprep.subr.mxu0 0.0
      %1718 = vmatpush1.msra.mxu0 0.0
      %1719 = vmatprep.mubr.f32.mxu0 0.0
      %1720 = vmatmul.mubr.f32.gmra.mrb[0].mxu0 %v1534
      %v1721 = vpop.f32.mrb[0].mxu0
      %v1722 = vadd.f32 %v1617, %v1721
      %v1723 = vpop.f32.mrb[0].mxu0
      %1724 = vmatprep.mubr.f32.mxu0 0.0
      %1725 = vmatmul.mubr.f32.gmra.mrb[0].mxu0 %v1536
      %v1726 = vpop.f32.mrb[0].mxu0
      %v1727 = vadd.f32 %v1622, %v1726
      %v1728 = vpop.f32.mrb[0].mxu0
      %1729 = vmatprep.mubr.f32.mxu0 0.0
      %1730 = vmatmul.mubr.f32.gmra.mrb[0].mxu0 %v1538
      %v1731 = vpop.f32.mrb[0].mxu0
      %v1732 = vadd.f32 %v1627, %v1731
      %v1733 = vpop.f32.mrb[0].mxu0
      %1734 = vmatprep.mubr.f32.mxu0 0.0
      %1735 = vmatmul.mubr.f32.gmra.mrb[0].mxu0 %v1540
      %v1736 = vpop.f32.mrb[0].mxu0
      %v1737 = vadd.f32 %v1632, %v1736
      %v1738 = vpop.f32.mrb[0].mxu0
      %1739 = vmatprep.mubr.f32.mxu0 0.0
      %1740 = vmatmul.mubr.f32.gmra.mrb[0].mxu0 %v1542
      %v1741 = vpop.f32.mrb[0].mxu0
      %v1742 = vadd.f32 %v1637, %v1741
      %v1743 = vpop.f32.mrb[0].mxu0
      %1744 = vmatprep.mubr.f32.mxu0 0.0
      %1745 = vmatmul.mubr.f32.gmra.mrb[0].mxu0 %v1544
      %v1746 = vpop.f32.mrb[0].mxu0
      %v1747 = vadd.f32 %v1642, %v1746
      %v1748 = vpop.f32.mrb[0].mxu0
      %1749 = vmatprep.mubr.f32.mxu0 0.0
      %1750 = vmatmul.mubr.f32.gmra.mrb[0].mxu0 %v1546
      %v1751 = vpop.f32.mrb[0].mxu0
      %v1752 = vadd.f32 %v1647, %v1751
      %v1753 = vpop.f32.mrb[0].mxu0
      %1754 = vmatprep.mubr.f32.mxu0 0.0
      %1755 = vmatmul.mubr.f32.gmra.mrb[0].mxu0 %v1548
      %v1756 = vpop.f32.mrb[0].mxu0
      %v1757 = vadd.f32 %v1652, %v1756
      %v1758 = vpop.f32.mrb[0].mxu0
      %1759 = vdwg.mxu0
      %v1760 = vsel %vm632, %v930, 0
      %v1762 = vsel %vm632, %v933, 0
      %v1764 = vsel %vm632, %v936, 0
      %v1766 = vsel %vm632, %v939, 0
      %v1768 = vsel %vm632, %v942, 0
      %v1770 = vsel %vm632, %v945, 0
      %v1772 = vsel %vm632, %v961, 0
      %v1774 = vsel %vm632, %v969, 0
      %1776 = vmatprep.subr.mxu0 0.0
      %1777 = vmatpush1.msra.mxu0 %v1462
      %1778 = vmatprep.subr.mxu0 0.0
      %1779 = vmatpush1.msra.mxu0 %v1463
      %1780 = vmatprep.subr.mxu0 0.0
      %1781 = vmatpush1.msra.mxu0 %v1464
      %1782 = vmatprep.subr.mxu0 0.0
      %1783 = vmatpush1.msra.mxu0 %v1465
      %1784 = vmatprep.subr.mxu0 0.0
      %1785 = vmatpush1.msra.mxu0 %v1466
      %1786 = vmatprep.subr.mxu0 0.0
      %1787 = vmatpush1.msra.mxu0 %v1467
      %1788 = vmatprep.subr.mxu0 0.0
      %1789 = vmatpush1.msra.mxu0 %v1468
      %1790 = vmatprep.subr.mxu0 0.0
      %1791 = vmatpush1.msra.mxu0 %v1469
      %1792 = vmatprep.subr.mxu0 0.0
      %1793 = vmatpush1.msra.mxu0 %v1470
      %1794 = vmatprep.subr.mxu0 0.0
      %1795 = vmatpush1.msra.mxu0 %v1471
      %1796 = vmatprep.subr.mxu0 0.0
      %1797 = vmatpush1.msra.mxu0 %v1472
      %1798 = vmatprep.subr.mxu0 0.0
      %1799 = vmatpush1.msra.mxu0 %v1473
      %1800 = vmatprep.subr.mxu0 0.0
      %1801 = vmatpush1.msra.mxu0 %v1474
      %1802 = vmatprep.subr.mxu0 0.0
      %1803 = vmatpush1.msra.mxu0 %v1475
      %1804 = vmatprep.subr.mxu0 0.0
      %1805 = vmatpush1.msra.mxu0 %v1476
      %1806 = vmatprep.subr.mxu0 0.0
      %1807 = vmatpush1.msra.mxu0 %v1477
      %1808 = vmatprep.subr.mxu0 0.0
      %1809 = vmatpush1.msra.mxu0 %v1478
      %1810 = vmatprep.subr.mxu0 0.0
      %1811 = vmatpush1.msra.mxu0 %v1479
      %1812 = vmatprep.subr.mxu0 0.0
      %1813 = vmatpush1.msra.mxu0 %v1480
      %1814 = vmatprep.subr.mxu0 0.0
      %1815 = vmatpush1.msra.mxu0 %v1481
      %1816 = vmatprep.subr.mxu0 0.0
      %1817 = vmatpush1.msra.mxu0 %v1482
      %1818 = vmatprep.subr.mxu0 0.0
      %1819 = vmatpush1.msra.mxu0 %v1483
      %1820 = vmatprep.subr.mxu0 0.0
      %1821 = vmatpush1.msra.mxu0 %v1484
      %1822 = vmatprep.subr.mxu0 0.0
      %1823 = vmatpush1.msra.mxu0 %v1485
      %1824 = vmatprep.subr.mxu0 0.0
      %1825 = vmatpush1.msra.mxu0 %v1486
      %1826 = vmatprep.subr.mxu0 0.0
      %1827 = vmatpush1.msra.mxu0 %v1487
      %1828 = vmatprep.subr.mxu0 0.0
      %1829 = vmatpush1.msra.mxu0 %v1488
      %1830 = vmatprep.subr.mxu0 0.0
      %1831 = vmatpush1.msra.mxu0 %v1489
      %1832 = vmatprep.subr.mxu0 0.0
      %1833 = vmatpush1.msra.mxu0 %v1490
      %1834 = vmatprep.subr.mxu0 0.0
      %1835 = vmatpush1.msra.mxu0 %v1491
      %1836 = vmatprep.subr.mxu0 0.0
      %1837 = vmatpush1.msra.mxu0 %v1492
      %1838 = vmatprep.subr.mxu0 0.0
      %1839 = vmatpush1.msra.mxu0 %v1493
      %1840 = vmatprep.mubr.f32.mxu0 %v1154
      %1841 = vmatmul.mubr.f32.gmra.mrb[0].mxu0 %v1130
      %v1842 = vpop.f32.mrb[0].mxu0
      %v1843 = vadd.f32 %v1722, %v1842
      %v1844 = vpop.f32.mrb[0].mxu0
      %1845 = vmatprep.mubr.f32.mxu0 %v1155
      %1846 = vmatmul.mubr.f32.gmra.mrb[0].mxu0 %v1131
      %v1847 = vpop.f32.mrb[0].mxu0
      %v1848 = vadd.f32 %v1727, %v1847
      %v1849 = vpop.f32.mrb[0].mxu0
      %1850 = vmatprep.mubr.f32.mxu0 %v1156
      %1851 = vmatmul.mubr.f32.gmra.mrb[0].mxu0 %v1132
      %v1852 = vpop.f32.mrb[0].mxu0
      %v1853 = vadd.f32 %v1732, %v1852
      %v1854 = vpop.f32.mrb[0].mxu0
      %1855 = vmatprep.mubr.f32.mxu0 %v1157
      %1856 = vmatmul.mubr.f32.gmra.mrb[0].mxu0 %v1133
      %v1857 = vpop.f32.mrb[0].mxu0
      %v1858 = vadd.f32 %v1737, %v1857
      %v1859 = vpop.f32.mrb[0].mxu0
      %1860 = vmatprep.mubr.f32.mxu0 %v1158
      %1861 = vmatmul.mubr.f32.gmra.mrb[0].mxu0 %v1134
      %v1862 = vpop.f32.mrb[0].mxu0
      %v1863 = vadd.f32 %v1742, %v1862
      %v1864 = vpop.f32.mrb[0].mxu0
      %1865 = vmatprep.mubr.f32.mxu0 %v1159
      %1866 = vmatmul.mubr.f32.gmra.mrb[0].mxu0 %v1135
      %v1867 = vpop.f32.mrb[0].mxu0
      %v1868 = vadd.f32 %v1747, %v1867
      %v1869 = vpop.f32.mrb[0].mxu0
      %1870 = vmatprep.mubr.f32.mxu0 %v1160
      %1871 = vmatmul.mubr.f32.gmra.mrb[0].mxu0 %v1136
      %v1872 = vpop.f32.mrb[0].mxu0
      %v1873 = vadd.f32 %v1752, %v1872
      %v1874 = vpop.f32.mrb[0].mxu0
      %1875 = vmatprep.mubr.f32.mxu0 %v1161
      %1876 = vmatmul.mubr.f32.gmra.mrb[0].mxu0 %v1137
      %v1877 = vpop.f32.mrb[0].mxu0
      %v1878 = vadd.f32 %v1757, %v1877
      %v1879 = vpop.f32.mrb[0].mxu0
      %1880 = vdwg.mxu0
      %1881 = vmatprep.subr.mxu0 0.0
      %1882 = vmatpush1.msra.mxu0 %v1494
      %1883 = vmatprep.subr.mxu0 0.0
      %1884 = vmatpush1.msra.mxu0 %v1495
      %1885 = vmatprep.subr.mxu0 0.0
      %1886 = vmatpush1.msra.mxu0 %v1496
      %1887 = vmatprep.subr.mxu0 0.0
      %1888 = vmatpush1.msra.mxu0 %v1497
      %1889 = vmatprep.subr.mxu0 0.0
      %1890 = vmatpush1.msra.mxu0 0.0
      %1891 = vmatprep.subr.mxu0 0.0
      %1892 = vmatpush1.msra.mxu0 0.0
      %1893 = vmatprep.subr.mxu0 0.0
      %1894 = vmatpush1.msra.mxu0 0.0
      %1895 = vmatprep.subr.mxu0 0.0
      %1896 = vmatpush1.msra.mxu0 0.0
      %1897 = vmatprep.subr.mxu0 0.0
      %1898 = vmatpush1.msra.mxu0 0.0
      %1899 = vmatprep.subr.mxu0 0.0
      %1900 = vmatpush1.msra.mxu0 0.0
      %1901 = vmatprep.subr.mxu0 0.0
      %1902 = vmatpush1.msra.mxu0 0.0
      %1903 = vmatprep.subr.mxu0 0.0
      %1904 = vmatpush1.msra.mxu0 0.0
      %1905 = vmatprep.subr.mxu0 0.0
      %1906 = vmatpush1.msra.mxu0 0.0
      %1907 = vmatprep.subr.mxu0 0.0
      %1908 = vmatpush1.msra.mxu0 0.0
      %1909 = vmatprep.subr.mxu0 0.0
      %1910 = vmatpush1.msra.mxu0 0.0
      %1911 = vmatprep.subr.mxu0 0.0
      %1912 = vmatpush1.msra.mxu0 0.0
      %1913 = vmatprep.subr.mxu0 0.0
      %1914 = vmatpush1.msra.mxu0 0.0
      %1915 = vmatprep.subr.mxu0 0.0
      %1916 = vmatpush1.msra.mxu0 0.0
      %1917 = vmatprep.subr.mxu0 0.0
      %1918 = vmatpush1.msra.mxu0 0.0
      %1919 = vmatprep.subr.mxu0 0.0
      %1920 = vmatpush1.msra.mxu0 0.0
      %1921 = vmatprep.subr.mxu0 0.0
      %1922 = vmatpush1.msra.mxu0 0.0
      %1923 = vmatprep.subr.mxu0 0.0
      %1924 = vmatpush1.msra.mxu0 0.0
      %1925 = vmatprep.subr.mxu0 0.0
      %1926 = vmatpush1.msra.mxu0 0.0
      %1927 = vmatprep.subr.mxu0 0.0
      %1928 = vmatpush1.msra.mxu0 0.0
      %1929 = vmatprep.subr.mxu0 0.0
      %1930 = vmatpush1.msra.mxu0 0.0
      %1931 = vmatprep.subr.mxu0 0.0
      %1932 = vmatpush1.msra.mxu0 0.0
      %1933 = vmatprep.subr.mxu0 0.0
      %1934 = vmatpush1.msra.mxu0 0.0
      %1935 = vmatprep.subr.mxu0 0.0
      %1936 = vmatpush1.msra.mxu0 0.0
      %1937 = vmatprep.subr.mxu0 0.0
      %1938 = vmatpush1.msra.mxu0 0.0
      %1939 = vmatprep.subr.mxu0 0.0
      %1940 = vmatpush1.msra.mxu0 0.0
      %1941 = vmatprep.subr.mxu0 0.0
      %1942 = vmatpush1.msra.mxu0 0.0
      %1943 = vmatprep.subr.mxu0 0.0
      %1944 = vmatpush1.msra.mxu0 0.0
      %1945 = vmatprep.mubr.f32.mxu0 0.0
      %1946 = vmatmul.mubr.f32.gmra.mrb[0].mxu0 %v1760
      %v1947 = vpop.f32.mrb[0].mxu0
      %v1948 = vadd.f32 %v1843, %v1947
      %v1949 = vpop.f32.mrb[0].mxu0
      %1950 = vmatprep.mubr.f32.mxu0 0.0
      %1951 = vmatmul.mubr.f32.gmra.mrb[0].mxu0 %v1762
      %v1952 = vpop.f32.mrb[0].mxu0
      %v1953 = vadd.f32 %v1848, %v1952
      %v1954 = vpop.f32.mrb[0].mxu0
      %1955 = vmatprep.mubr.f32.mxu0 0.0
      %1956 = vmatmul.mubr.f32.gmra.mrb[0].mxu0 %v1764
      %v1957 = vpop.f32.mrb[0].mxu0
      %v1958 = vadd.f32 %v1853, %v1957
      %v1959 = vpop.f32.mrb[0].mxu0
      %1960 = vmatprep.mubr.f32.mxu0 0.0
      %1961 = vmatmul.mubr.f32.gmra.mrb[0].mxu0 %v1766
      %v1962 = vpop.f32.mrb[0].mxu0
      %v1963 = vadd.f32 %v1858, %v1962
      %v1964 = vpop.f32.mrb[0].mxu0
      %1965 = vmatprep.mubr.f32.mxu0 0.0
      %1966 = vmatmul.mubr.f32.gmra.mrb[0].mxu0 %v1768
      %v1967 = vpop.f32.mrb[0].mxu0
      %v1968 = vadd.f32 %v1863, %v1967
      %v1969 = vpop.f32.mrb[0].mxu0
      %1970 = vmatprep.mubr.f32.mxu0 0.0
      %1971 = vmatmul.mubr.f32.gmra.mrb[0].mxu0 %v1770
      %v1972 = vpop.f32.mrb[0].mxu0
      %v1973 = vadd.f32 %v1868, %v1972
      %v1974 = vpop.f32.mrb[0].mxu0
      %1975 = vmatprep.mubr.f32.mxu0 0.0
      %1976 = vmatmul.mubr.f32.gmra.mrb[0].mxu0 %v1772
      %v1977 = vpop.f32.mrb[0].mxu0
      %v1978 = vadd.f32 %v1873, %v1977
      %v1979 = vpop.f32.mrb[0].mxu0
      %1980 = vmatprep.mubr.f32.mxu0 0.0
      %1981 = vmatmul.mubr.f32.gmra.mrb[0].mxu0 %v1774
      %v1982 = vpop.f32.mrb[0].mxu0
      %v1983 = vadd.f32 %v1878, %v1982
      %v1984 = vpop.f32.mrb[0].mxu0
      %1985 = vdwg.mxu0
      %v1986 = vld [vmem:[%s6] sm:$0x1]
      %v1988 = vlaneseq
      %v1989 = vshrl.u32 %v1988, 7
      %v1990 = vsub.s32 0, %v1989
      %v1991 = vrot.slane %v1986, %v1990
      %v1993 = vadd.f32 %v1948, %v1991
      %v1994 = vadd.f32 %v1953, %v1991
      %v1995 = vadd.f32 %v1958, %v1991
      %v1996 = vadd.f32 %v1963, %v1991
      %v1997 = vadd.f32 %v1968, %v1991
      %v1998 = vadd.f32 %v1973, %v1991
      %v1999 = vadd.f32 %v1978, %v1991
      %v2000 = vadd.f32 %v1983, %v1991
      %v2001 = vmax.f32 %v1993, 0.0
      %v2002 = vmax.f32 %v1994, 0.0
      %v2003 = vmax.f32 %v1995, 0.0
      %v2004 = vmax.f32 %v1996, 0.0
      %v2005 = vmax.f32 %v1997, 0.0
      %v2006 = vmax.f32 %v1998, 0.0
      %v2007 = vmax.f32 %v1999, 0.0
      %v2008 = vmax.f32 %v2000, 0.0
      %2009 = vst.msk [vmem:[#allocation3] sm:$0xff] %vm632, 0.0
      %2010 = vst.msk [vmem:[#allocation3 + $0x8] sm:$0x3] %vm833, 0.0
      %2011 = vst.msk [vmem:[#allocation3 + $0x10] sm:$0xff] %vm632, 0.0
      %2012 = vst.msk [vmem:[#allocation3 + $0x18] sm:$0x3] %vm833, 0.0
      %2013 = vst.msk [vmem:[#allocation3 + $0x20] sm:$0xff] %vm632, 0.0
      %2014 = vst.msk [vmem:[#allocation3 + $0x28] sm:$0x3] %vm833, 0.0
      %2015 = vst.msk [vmem:[#allocation3 + $0x30] sm:$0xff] %vm632, 0.0
      %2016 = vst.msk [vmem:[#allocation3 + $0x38] sm:$0x3] %vm833, 0.0
      %2017 = vst.msk [vmem:[#allocation3 + $0x40] sm:$0xff] %vm632, 0.0
      %2018 = vst.msk [vmem:[#allocation3 + $0x48] sm:$0x3] %vm833, 0.0
      %2019 = vst.msk [vmem:[#allocation3 + $0x50] sm:$0xff] %vm632, 0.0
      %2020 = vst.msk [vmem:[#allocation3 + $0x58] sm:$0x3] %vm833, 0.0
      %2021 = vst.msk [vmem:[#allocation3 + $0x60] sm:$0xff] %vm632, 0.0
      %2022 = vst.msk [vmem:[#allocation3 + $0x68] sm:$0x3] %vm833, 0.0
      %2023 = vst.msk [vmem:[#allocation3 + $0x70] sm:$0xff] %vm632, 0.0
      %2024 = vst.msk [vmem:[#allocation3 + $0x78] sm:$0x3] %vm833, 0.0
      %2025 = vst.msk [vmem:[#allocation3 + $0x80] sm:$0xff] %vm632, 0.0
      %2026 = vst.msk [vmem:[#allocation3 + $0x88] sm:$0x3] %vm833, 0.0
      %2027 = vst.msk [vmem:[#allocation3 + $0x90] sm:$0xff] %vm632, 0.0
      %2028 = vst.msk [vmem:[#allocation3 + $0x98] sm:$0x3] %vm833, 0.0
      %s2029 = scalar_lea.vmem [#allocation3], 16
      %2030 = vst.msk [vmem:[%s2029 + $0x1] sm:$0xff] %vm632, %v2001
      %2031 = vst.msk [vmem:[%s2029 + $0x11] sm:$0xff] %vm632, %v2002
      %2032 = vst.msk [vmem:[%s2029 + $0x21] sm:$0xff] %vm632, %v2003
      %2033 = vst.msk [vmem:[%s2029 + $0x31] sm:$0xff] %vm632, %v2004
      %2034 = vst.msk [vmem:[%s2029 + $0x41] sm:$0xff] %vm632, %v2005
      %2035 = vst.msk [vmem:[%s2029 + $0x51] sm:$0xff] %vm632, %v2006
      %2036 = vst.msk [vmem:[%s2029 + $0x61] sm:$0xff] %vm632, %v2007
      %2037 = vst.msk [vmem:[%s2029 + $0x71] sm:$0xff] %vm632, %v2008
      %v2038 = vld [vmem:[#allocation3] sm:$0xff]
      %v2039 = vld [vmem:[#allocation3 + $0x8] sm:$0x3]
      %v2040 = vld [vmem:[#allocation3 + $0x10] sm:$0xff]
      %v2041 = vld [vmem:[#allocation3 + $0x18] sm:$0x3]
      %v2042 = vld [vmem:[#allocation3 + $0x20] sm:$0xff]
      %v2043 = vld [vmem:[#allocation3 + $0x28] sm:$0x3]
      %v2044 = vld [vmem:[#allocation3 + $0x30] sm:$0xff]
      %v2045 = vld [vmem:[#allocation3 + $0x38] sm:$0x3]
      %v2046 = vld [vmem:[#allocation3 + $0x40] sm:$0xff]
      %v2047 = vld [vmem:[#allocation3 + $0x48] sm:$0x3]
      %v2048 = vld [vmem:[#allocation3 + $0x50] sm:$0xff]
      %v2049 = vld [vmem:[#allocation3 + $0x58] sm:$0x3]
      %v2050 = vld [vmem:[#allocation3 + $0x60] sm:$0xff]
      %v2051 = vld [vmem:[#allocation3 + $0x68] sm:$0x3]
      %v2052 = vld [vmem:[#allocation3 + $0x70] sm:$0xff]
      %v2053 = vld [vmem:[#allocation3 + $0x78] sm:$0x3]
      %v2054 = vld [vmem:[#allocation3 + $0x80] sm:$0xff]
      %v2055 = vld [vmem:[#allocation3 + $0x88] sm:$0x3]
      %v2056 = vld [vmem:[#allocation3 + $0x90] sm:$0xff]
      %v2057 = vld [vmem:[#allocation3 + $0x98] sm:$0x3]
      %v2074 = vrot.slane %v2038, 1
      %v2075 = vrot.slane %v2039, 1
      %v2076 = vsel %vm389, %v2074, %v2075
      %v2077 = vrot.slane %v2040, 1
      %v2078 = vrot.slane %v2041, 1
      %v2079 = vsel %vm389, %v2077, %v2078
      %v2080 = vrot.slane %v2042, 1
      %v2081 = vrot.slane %v2043, 1
      %v2082 = vsel %vm389, %v2080, %v2081
      %v2083 = vrot.slane %v2044, 1
      %v2084 = vrot.slane %v2045, 1
      %v2085 = vsel %vm389, %v2083, %v2084
      %v2086 = vrot.slane %v2046, 1
      %v2087 = vrot.slane %v2047, 1
      %v2088 = vsel %vm389, %v2086, %v2087
      %v2089 = vrot.slane %v2048, 1
      %v2090 = vrot.slane %v2049, 1
      %v2091 = vsel %vm389, %v2089, %v2090
      %v2092 = vrot.slane %v2050, 1
      %v2093 = vrot.slane %v2051, 1
      %v2094 = vsel %vm389, %v2092, %v2093
      %v2095 = vrot.slane %v2052, 1
      %v2096 = vrot.slane %v2053, 1
      %v2097 = vsel %vm389, %v2095, %v2096
      %v2098 = vrot.slane %v2038, 2
      %v2099 = vrot.slane %v2039, 2
      %v2100 = vsel %vm414, %v2098, %v2099
      %v2101 = vrot.slane %v2040, 2
      %v2102 = vrot.slane %v2041, 2
      %v2103 = vsel %vm414, %v2101, %v2102
      %v2104 = vrot.slane %v2042, 2
      %v2105 = vrot.slane %v2043, 2
      %v2106 = vsel %vm414, %v2104, %v2105
      %v2107 = vrot.slane %v2044, 2
      %v2108 = vrot.slane %v2045, 2
      %v2109 = vsel %vm414, %v2107, %v2108
      %v2110 = vrot.slane %v2046, 2
      %v2111 = vrot.slane %v2047, 2
      %v2112 = vsel %vm414, %v2110, %v2111
      %v2113 = vrot.slane %v2048, 2
      %v2114 = vrot.slane %v2049, 2
      %v2115 = vsel %vm414, %v2113, %v2114
      %v2116 = vrot.slane %v2050, 2
      %v2117 = vrot.slane %v2051, 2
      %v2118 = vsel %vm414, %v2116, %v2117
      %v2119 = vrot.slane %v2052, 2
      %v2120 = vrot.slane %v2053, 2
      %v2121 = vsel %vm414, %v2119, %v2120
      %v2124 = vrot.slane %v2054, 1
      %v2125 = vrot.slane %v2055, 1
      %v2126 = vsel %vm389, %v2124, %v2125
      %v2135 = vrot.slane %v2054, 2
      %v2136 = vrot.slane %v2055, 2
      %v2137 = vsel %vm414, %v2135, %v2136
      %v2140 = vrot.slane %v2056, 1
      %v2141 = vrot.slane %v2057, 1
      %v2142 = vsel %vm389, %v2140, %v2141
      %v2143 = vrot.slane %v2056, 2
      %v2144 = vrot.slane %v2057, 2
      %v2145 = vsel %vm414, %v2143, %v2144
      %2146 = vrot.lane.b32.xlu0 %v2076, 32
      %v2147 = vpop.permute.xlu0 %2146
      %2148 = vrot.lane.b32.xlu0 %v2079, 32
      %v2149 = vpop.permute.xlu0 %2148
      %2150 = vrot.lane.b32.xlu0 %v2082, 32
      %v2151 = vpop.permute.xlu0 %2150
      %2152 = vrot.lane.b32.xlu0 %v2085, 32
      %v2153 = vpop.permute.xlu0 %2152
      %2154 = vrot.lane.b32.xlu0 %v2088, 32
      %v2155 = vpop.permute.xlu0 %2154
      %2156 = vrot.lane.b32.xlu0 %v2091, 32
      %v2157 = vpop.permute.xlu0 %2156
      %2158 = vrot.lane.b32.xlu0 %v2094, 32
      %v2159 = vpop.permute.xlu0 %2158
      %2160 = vrot.lane.b32.xlu0 %v2097, 32
      %v2161 = vpop.permute.xlu0 %2160
      %2170 = vrot.lane.b32.xlu0 %v2100, 64
      %v2171 = vpop.permute.xlu0 %2170
      %2172 = vrot.lane.b32.xlu0 %v2103, 64
      %v2173 = vpop.permute.xlu0 %2172
      %2174 = vrot.lane.b32.xlu0 %v2106, 64
      %v2175 = vpop.permute.xlu0 %2174
      %2176 = vrot.lane.b32.xlu0 %v2109, 64
      %v2177 = vpop.permute.xlu0 %2176
      %2178 = vrot.lane.b32.xlu0 %v2112, 64
      %v2179 = vpop.permute.xlu0 %2178
      %2180 = vrot.lane.b32.xlu0 %v2115, 64
      %v2181 = vpop.permute.xlu0 %2180
      %2182 = vrot.lane.b32.xlu0 %v2118, 64
      %v2183 = vpop.permute.xlu0 %2182
      %2184 = vrot.lane.b32.xlu0 %v2121, 64
      %v2185 = vpop.permute.xlu0 %2184
      %2194 = vrot.lane.b32.xlu0 %v2040, 96
      %v2195 = vpop.permute.xlu0 %2194
      %2196 = vrot.lane.b32.xlu0 %v2042, 96
      %v2197 = vpop.permute.xlu0 %2196
      %2198 = vrot.lane.b32.xlu0 %v2044, 96
      %v2199 = vpop.permute.xlu0 %2198
      %2200 = vrot.lane.b32.xlu0 %v2046, 96
      %v2201 = vpop.permute.xlu0 %2200
      %2202 = vrot.lane.b32.xlu0 %v2048, 96
      %v2203 = vpop.permute.xlu0 %2202
      %2204 = vrot.lane.b32.xlu0 %v2050, 96
      %v2205 = vpop.permute.xlu0 %2204
      %2206 = vrot.lane.b32.xlu0 %v2052, 96
      %v2207 = vpop.permute.xlu0 %2206
      %2208 = vrot.lane.b32.xlu0 %v2054, 96
      %v2209 = vpop.permute.xlu0 %2208
      %2218 = vrot.lane.b32.xlu0 %v2103, 32
      %v2219 = vpop.permute.xlu0 %2218
      %2220 = vrot.lane.b32.xlu0 %v2106, 32
      %v2221 = vpop.permute.xlu0 %2220
      %2222 = vrot.lane.b32.xlu0 %v2109, 32
      %v2223 = vpop.permute.xlu0 %2222
      %2224 = vrot.lane.b32.xlu0 %v2112, 32
      %v2225 = vpop.permute.xlu0 %2224
      %2226 = vrot.lane.b32.xlu0 %v2115, 32
      %v2227 = vpop.permute.xlu0 %2226
      %2228 = vrot.lane.b32.xlu0 %v2118, 32
      %v2229 = vpop.permute.xlu0 %2228
      %2230 = vrot.lane.b32.xlu0 %v2121, 32
      %v2231 = vpop.permute.xlu0 %2230
      %2232 = vrot.lane.b32.xlu0 %v2137, 32
      %v2233 = vpop.permute.xlu0 %2232
      %2242 = vrot.lane.b32.xlu0 %v2042, 64
      %v2243 = vpop.permute.xlu0 %2242
      %2244 = vrot.lane.b32.xlu0 %v2044, 64
      %v2245 = vpop.permute.xlu0 %2244
      %2246 = vrot.lane.b32.xlu0 %v2046, 64
      %v2247 = vpop.permute.xlu0 %2246
      %2248 = vrot.lane.b32.xlu0 %v2048, 64
      %v2249 = vpop.permute.xlu0 %2248
      %2250 = vrot.lane.b32.xlu0 %v2050, 64
      %v2251 = vpop.permute.xlu0 %2250
      %2252 = vrot.lane.b32.xlu0 %v2052, 64
      %v2253 = vpop.permute.xlu0 %2252
      %2254 = vrot.lane.b32.xlu0 %v2054, 64
      %v2255 = vpop.permute.xlu0 %2254
      %2256 = vrot.lane.b32.xlu0 %v2056, 64
      %v2257 = vpop.permute.xlu0 %2256
      %2266 = vrot.lane.b32.xlu0 %v2082, 96
      %v2267 = vpop.permute.xlu0 %2266
      %2268 = vrot.lane.b32.xlu0 %v2085, 96
      %v2269 = vpop.permute.xlu0 %2268
      %2270 = vrot.lane.b32.xlu0 %v2088, 96
      %v2271 = vpop.permute.xlu0 %2270
      %2272 = vrot.lane.b32.xlu0 %v2091, 96
      %v2273 = vpop.permute.xlu0 %2272
      %2274 = vrot.lane.b32.xlu0 %v2094, 96
      %v2275 = vpop.permute.xlu0 %2274
      %2276 = vrot.lane.b32.xlu0 %v2097, 96
      %v2277 = vpop.permute.xlu0 %2276
      %2278 = vrot.lane.b32.xlu0 %v2126, 96
      %v2279 = vpop.permute.xlu0 %2278
      %2280 = vrot.lane.b32.xlu0 %v2142, 96
      %v2281 = vpop.permute.xlu0 %2280
      %v2290 = vsel %vm632, %v2038, %v2147
      %v2291 = vsel %vm632, %v2040, %v2149
      %v2292 = vsel %vm632, %v2042, %v2151
      %v2293 = vsel %vm632, %v2044, %v2153
      %v2294 = vsel %vm632, %v2046, %v2155
      %v2295 = vsel %vm632, %v2048, %v2157
      %v2296 = vsel %vm632, %v2050, %v2159
      %v2297 = vsel %vm632, %v2052, %v2161
      %v2298 = vsel %vm650, %v2290, %v2171
      %v2299 = vsel %vm650, %v2291, %v2173
      %v2300 = vsel %vm650, %v2292, %v2175
      %v2301 = vsel %vm650, %v2293, %v2177
      %v2302 = vsel %vm650, %v2294, %v2179
      %v2303 = vsel %vm650, %v2295, %v2181
      %v2304 = vsel %vm650, %v2296, %v2183
      %v2305 = vsel %vm650, %v2297, %v2185
      %v2306 = vsel %vm668, %v2298, %v2195
      %v2307 = vsel %vm668, %v2299, %v2197
      %v2308 = vsel %vm668, %v2300, %v2199
      %v2309 = vsel %vm668, %v2301, %v2201
      %v2310 = vsel %vm668, %v2302, %v2203
      %v2311 = vsel %vm668, %v2303, %v2205
      %v2312 = vsel %vm668, %v2304, %v2207
      %v2313 = vsel %vm668, %v2305, %v2209
      %v2314 = vsel %vm632, %v2079, %v2219
      %v2315 = vsel %vm632, %v2082, %v2221
      %v2316 = vsel %vm632, %v2085, %v2223
      %v2317 = vsel %vm632, %v2088, %v2225
      %v2318 = vsel %vm632, %v2091, %v2227
      %v2319 = vsel %vm632, %v2094, %v2229
      %v2320 = vsel %vm632, %v2097, %v2231
      %v2321 = vsel %vm632, %v2126, %v2233
      %v2322 = vsel %vm650, %v2314, %v2243
      %v2323 = vsel %vm650, %v2315, %v2245
      %v2324 = vsel %vm650, %v2316, %v2247
      %v2325 = vsel %vm650, %v2317, %v2249
      %v2326 = vsel %vm650, %v2318, %v2251
      %v2327 = vsel %vm650, %v2319, %v2253
      %v2328 = vsel %vm650, %v2320, %v2255
      %v2329 = vsel %vm650, %v2321, %v2257
      %v2330 = vsel %vm668, %v2322, %v2267
      %v2331 = vsel %vm668, %v2323, %v2269
      %v2332 = vsel %vm668, %v2324, %v2271
      %v2333 = vsel %vm668, %v2325, %v2273
      %v2334 = vsel %vm668, %v2326, %v2275
      %v2335 = vsel %vm668, %v2327, %v2277
      %v2336 = vsel %vm668, %v2328, %v2279
      %v2337 = vsel %vm668, %v2329, %v2281
      %v2338 = vld [vmem:[%s7] sm:$0xff]
      %v2339 = vld [vmem:[%s7 + $0x8] sm:$0xff]
      %v2340 = vld [vmem:[%s7 + $0x10] sm:$0xff]
      %v2341 = vld [vmem:[%s7 + $0x18] sm:$0xff]
      %v2342 = vld [vmem:[%s7 + $0x20] sm:$0xff]
      %v2343 = vld [vmem:[%s7 + $0x28] sm:$0xff]
      %v2344 = vld [vmem:[%s7 + $0x30] sm:$0xff]
      %v2345 = vld [vmem:[%s7 + $0x38] sm:$0xff]
      %v2346 = vld [vmem:[%s7 + $0x40] sm:$0xff]
      %v2347 = vld [vmem:[%s7 + $0x48] sm:$0xff]
      %v2348 = vld [vmem:[%s7 + $0x50] sm:$0xff]
      %v2349 = vld [vmem:[%s7 + $0x58] sm:$0xff]
      %v2350 = vld [vmem:[%s7 + $0x60] sm:$0xff]
      %v2351 = vld [vmem:[%s7 + $0x68] sm:$0xff]
      %v2352 = vld [vmem:[%s7 + $0x70] sm:$0xff]
      %v2353 = vld [vmem:[%s7 + $0x78] sm:$0xff]
      %v2354 = vld [vmem:[%s7 + $0x80] sm:$0xff]
      %v2355 = vld [vmem:[%s7 + $0x88] sm:$0xff]
      %v2356 = vld [vmem:[%s7 + $0x90] sm:$0xff]
      %v2357 = vld [vmem:[%s7 + $0x98] sm:$0xff]
      %v2358 = vld [vmem:[%s7 + $0xa0] sm:$0xff]
      %v2359 = vld [vmem:[%s7 + $0xa8] sm:$0xff]
      %v2360 = vld [vmem:[%s7 + $0xb0] sm:$0xff]
      %v2361 = vld [vmem:[%s7 + $0xb8] sm:$0xff]
      %v2362 = vld [vmem:[%s7 + $0xc0] sm:$0xff]
      %v2363 = vld [vmem:[%s7 + $0xc8] sm:$0xff]
      %v2364 = vld [vmem:[%s7 + $0xd0] sm:$0xff]
      %v2365 = vld [vmem:[%s7 + $0xd8] sm:$0xff]
      %v2366 = vld [vmem:[%s7 + $0xe0] sm:$0xff]
      %v2367 = vld [vmem:[%s7 + $0xe8] sm:$0xff]
      %v2368 = vld [vmem:[%s7 + $0xf0] sm:$0xff]
      %v2369 = vld [vmem:[%s7 + $0xf8] sm:$0xff]
      %v2370 = vld [vmem:[%s7 + $0x100] sm:$0xff]
      %v2371 = vld [vmem:[%s7 + $0x108] sm:$0xff]
      %v2372 = vld [vmem:[%s7 + $0x110] sm:$0xff]
      %v2373 = vld [vmem:[%s7 + $0x118] sm:$0xff]
      %v2374 = vld [vmem:[%s8] sm:$0x1]
      %v2376 = vlaneseq
      %v2377 = vshrl.u32 %v2376, 7
      %v2378 = vsub.s32 0, %v2377
      %v2379 = vrot.slane %v2374, %v2378
      %v2381 = vsel %vm632, %v2106, 0
      %v2383 = vsel %vm632, %v2109, 0
      %v2385 = vsel %vm632, %v2112, 0
      %v2387 = vsel %vm632, %v2115, 0
      %v2389 = vsel %vm632, %v2118, 0
      %v2391 = vsel %vm632, %v2121, 0
      %v2393 = vsel %vm632, %v2137, 0
      %v2395 = vsel %vm632, %v2145, 0
      %2397 = vmatprep.subr.mxu0 0.0
      %2398 = vmatpush1.msra.mxu0 %v2338
      %2399 = vmatprep.subr.mxu0 0.0
      %2400 = vmatpush1.msra.mxu0 %v2339
      %2401 = vmatprep.subr.mxu0 0.0
      %2402 = vmatpush1.msra.mxu0 %v2340
      %2403 = vmatprep.subr.mxu0 0.0
      %2404 = vmatpush1.msra.mxu0 %v2341
      %2405 = vmatprep.subr.mxu0 0.0
      %2406 = vmatpush1.msra.mxu0 %v2342
      %2407 = vmatprep.subr.mxu0 0.0
      %2408 = vmatpush1.msra.mxu0 %v2343
      %2409 = vmatprep.subr.mxu0 0.0
      %2410 = vmatpush1.msra.mxu0 %v2344
      %2411 = vmatprep.subr.mxu0 0.0
      %2412 = vmatpush1.msra.mxu0 %v2345
      %2413 = vmatprep.subr.mxu0 0.0
      %2414 = vmatpush1.msra.mxu0 %v2346
      %2415 = vmatprep.subr.mxu0 0.0
      %2416 = vmatpush1.msra.mxu0 %v2347
      %2417 = vmatprep.subr.mxu0 0.0
      %2418 = vmatpush1.msra.mxu0 %v2348
      %2419 = vmatprep.subr.mxu0 0.0
      %2420 = vmatpush1.msra.mxu0 %v2349
      %2421 = vmatprep.subr.mxu0 0.0
      %2422 = vmatpush1.msra.mxu0 %v2350
      %2423 = vmatprep.subr.mxu0 0.0
      %2424 = vmatpush1.msra.mxu0 %v2351
      %2425 = vmatprep.subr.mxu0 0.0
      %2426 = vmatpush1.msra.mxu0 %v2352
      %2427 = vmatprep.subr.mxu0 0.0
      %2428 = vmatpush1.msra.mxu0 %v2353
      %2429 = vmatprep.subr.mxu0 0.0
      %2430 = vmatpush1.msra.mxu0 %v2354
      %2431 = vmatprep.subr.mxu0 0.0
      %2432 = vmatpush1.msra.mxu0 %v2355
      %2433 = vmatprep.subr.mxu0 0.0
      %2434 = vmatpush1.msra.mxu0 %v2356
      %2435 = vmatprep.subr.mxu0 0.0
      %2436 = vmatpush1.msra.mxu0 %v2357
      %2437 = vmatprep.subr.mxu0 0.0
      %2438 = vmatpush1.msra.mxu0 %v2358
      %2439 = vmatprep.subr.mxu0 0.0
      %2440 = vmatpush1.msra.mxu0 %v2359
      %2441 = vmatprep.subr.mxu0 0.0
      %2442 = vmatpush1.msra.mxu0 %v2360
      %2443 = vmatprep.subr.mxu0 0.0
      %2444 = vmatpush1.msra.mxu0 %v2361
      %2445 = vmatprep.subr.mxu0 0.0
      %2446 = vmatpush1.msra.mxu0 %v2362
      %2447 = vmatprep.subr.mxu0 0.0
      %2448 = vmatpush1.msra.mxu0 %v2363
      %2449 = vmatprep.subr.mxu0 0.0
      %2450 = vmatpush1.msra.mxu0 %v2364
      %2451 = vmatprep.subr.mxu0 0.0
      %2452 = vmatpush1.msra.mxu0 %v2365
      %2453 = vmatprep.subr.mxu0 0.0
      %2454 = vmatpush1.msra.mxu0 %v2366
      %2455 = vmatprep.subr.mxu0 0.0
      %2456 = vmatpush1.msra.mxu0 %v2367
      %2457 = vmatprep.subr.mxu0 0.0
      %2458 = vmatpush1.msra.mxu0 %v2368
      %2459 = vmatprep.subr.mxu0 0.0
      %2460 = vmatpush1.msra.mxu0 %v2369
      %2461 = vmatprep.mubr.f32.mxu0 %v2330
      %2462 = vmatmul.mubr.f32.gmra.mrb[0].mxu0 %v2306
      %v2463 = vpop.f32.mrb[0].mxu0
      %v2464 = vadd.f32 %v2379, %v2463
      %v2465 = vpop.f32.mrb[0].mxu0
      %2466 = vmatprep.mubr.f32.mxu0 %v2331
      %2467 = vmatmul.mubr.f32.gmra.mrb[0].mxu0 %v2307
      %v2468 = vpop.f32.mrb[0].mxu0
      %v2469 = vadd.f32 %v2379, %v2468
      %v2470 = vpop.f32.mrb[0].mxu0
      %2471 = vmatprep.mubr.f32.mxu0 %v2332
      %2472 = vmatmul.mubr.f32.gmra.mrb[0].mxu0 %v2308
      %v2473 = vpop.f32.mrb[0].mxu0
      %v2474 = vadd.f32 %v2379, %v2473
      %v2475 = vpop.f32.mrb[0].mxu0
      %2476 = vmatprep.mubr.f32.mxu0 %v2333
      %2477 = vmatmul.mubr.f32.gmra.mrb[0].mxu0 %v2309
      %v2478 = vpop.f32.mrb[0].mxu0
      %v2479 = vadd.f32 %v2379, %v2478
      %v2480 = vpop.f32.mrb[0].mxu0
      %2481 = vmatprep.mubr.f32.mxu0 %v2334
      %2482 = vmatmul.mubr.f32.gmra.mrb[0].mxu0 %v2310
      %v2483 = vpop.f32.mrb[0].mxu0
      %v2484 = vadd.f32 %v2379, %v2483
      %v2485 = vpop.f32.mrb[0].mxu0
      %2486 = vmatprep.mubr.f32.mxu0 %v2335
      %2487 = vmatmul.mubr.f32.gmra.mrb[0].mxu0 %v2311
      %v2488 = vpop.f32.mrb[0].mxu0
      %v2489 = vadd.f32 %v2379, %v2488
      %v2490 = vpop.f32.mrb[0].mxu0
      %2491 = vmatprep.mubr.f32.mxu0 %v2336
      %2492 = vmatmul.mubr.f32.gmra.mrb[0].mxu0 %v2312
      %v2493 = vpop.f32.mrb[0].mxu0
      %v2494 = vadd.f32 %v2379, %v2493
      %v2495 = vpop.f32.mrb[0].mxu0
      %2496 = vmatprep.mubr.f32.mxu0 %v2337
      %2497 = vmatmul.mubr.f32.gmra.mrb[0].mxu0 %v2313
      %v2498 = vpop.f32.mrb[0].mxu0
      %v2499 = vadd.f32 %v2379, %v2498
      %v2500 = vpop.f32.mrb[0].mxu0
      %2501 = vdwg.mxu0
      %2502 = vmatprep.subr.mxu0 0.0
      %2503 = vmatpush1.msra.mxu0 %v2370
      %2504 = vmatprep.subr.mxu0 0.0
      %2505 = vmatpush1.msra.mxu0 %v2371
      %2506 = vmatprep.subr.mxu0 0.0
      %2507 = vmatpush1.msra.mxu0 %v2372
      %2508 = vmatprep.subr.mxu0 0.0
      %2509 = vmatpush1.msra.mxu0 %v2373
      %2510 = vmatprep.subr.mxu0 0.0
      %2511 = vmatpush1.msra.mxu0 0.0
      %2512 = vmatprep.subr.mxu0 0.0
      %2513 = vmatpush1.msra.mxu0 0.0
      %2514 = vmatprep.subr.mxu0 0.0
      %2515 = vmatpush1.msra.mxu0 0.0
      %2516 = vmatprep.subr.mxu0 0.0
      %2517 = vmatpush1.msra.mxu0 0.0
      %2518 = vmatprep.subr.mxu0 0.0
      %2519 = vmatpush1.msra.mxu0 0.0
      %2520 = vmatprep.subr.mxu0 0.0
      %2521 = vmatpush1.msra.mxu0 0.0
      %2522 = vmatprep.subr.mxu0 0.0
      %2523 = vmatpush1.msra.mxu0 0.0
      %2524 = vmatprep.subr.mxu0 0.0
      %2525 = vmatpush1.msra.mxu0 0.0
      %2526 = vmatprep.subr.mxu0 0.0
      %2527 = vmatpush1.msra.mxu0 0.0
      %2528 = vmatprep.subr.mxu0 0.0
      %2529 = vmatpush1.msra.mxu0 0.0
      %2530 = vmatprep.subr.mxu0 0.0
      %2531 = vmatpush1.msra.mxu0 0.0
      %2532 = vmatprep.subr.mxu0 0.0
      %2533 = vmatpush1.msra.mxu0 0.0
      %2534 = vmatprep.subr.mxu0 0.0
      %2535 = vmatpush1.msra.mxu0 0.0
      %2536 = vmatprep.subr.mxu0 0.0
      %2537 = vmatpush1.msra.mxu0 0.0
      %2538 = vmatprep.subr.mxu0 0.0
      %2539 = vmatpush1.msra.mxu0 0.0
      %2540 = vmatprep.subr.mxu0 0.0
      %2541 = vmatpush1.msra.mxu0 0.0
      %2542 = vmatprep.subr.mxu0 0.0
      %2543 = vmatpush1.msra.mxu0 0.0
      %2544 = vmatprep.subr.mxu0 0.0
      %2545 = vmatpush1.msra.mxu0 0.0
      %2546 = vmatprep.subr.mxu0 0.0
      %2547 = vmatpush1.msra.mxu0 0.0
      %2548 = vmatprep.subr.mxu0 0.0
      %2549 = vmatpush1.msra.mxu0 0.0
      %2550 = vmatprep.subr.mxu0 0.0
      %2551 = vmatpush1.msra.mxu0 0.0
      %2552 = vmatprep.subr.mxu0 0.0
      %2553 = vmatpush1.msra.mxu0 0.0
      %2554 = vmatprep.subr.mxu0 0.0
      %2555 = vmatpush1.msra.mxu0 0.0
      %2556 = vmatprep.subr.mxu0 0.0
      %2557 = vmatpush1.msra.mxu0 0.0
      %2558 = vmatprep.subr.mxu0 0.0
      %2559 = vmatpush1.msra.mxu0 0.0
      %2560 = vmatprep.subr.mxu0 0.0
      %2561 = vmatpush1.msra.mxu0 0.0
      %2562 = vmatprep.subr.mxu0 0.0
      %2563 = vmatpush1.msra.mxu0 0.0
      %2564 = vmatprep.subr.mxu0 0.0
      %2565 = vmatpush1.msra.mxu0 0.0
      %2566 = vmatprep.mubr.f32.mxu0 0.0
      %2567 = vmatmul.mubr.f32.gmra.mrb[0].mxu0 %v2381
      %v2568 = vpop.f32.mrb[0].mxu0
      %v2569 = vadd.f32 %v2464, %v2568
      %v2570 = vpop.f32.mrb[0].mxu0
      %2571 = vmatprep.mubr.f32.mxu0 0.0
      %2572 = vmatmul.mubr.f32.gmra.mrb[0].mxu0 %v2383
      %v2573 = vpop.f32.mrb[0].mxu0
      %v2574 = vadd.f32 %v2469, %v2573
      %v2575 = vpop.f32.mrb[0].mxu0
      %2576 = vmatprep.mubr.f32.mxu0 0.0
      %2577 = vmatmul.mubr.f32.gmra.mrb[0].mxu0 %v2385
      %v2578 = vpop.f32.mrb[0].mxu0
      %v2579 = vadd.f32 %v2474, %v2578
      %v2580 = vpop.f32.mrb[0].mxu0
      %2581 = vmatprep.mubr.f32.mxu0 0.0
      %2582 = vmatmul.mubr.f32.gmra.mrb[0].mxu0 %v2387
      %v2583 = vpop.f32.mrb[0].mxu0
      %v2584 = vadd.f32 %v2479, %v2583
      %v2585 = vpop.f32.mrb[0].mxu0
      %2586 = vmatprep.mubr.f32.mxu0 0.0
      %2587 = vmatmul.mubr.f32.gmra.mrb[0].mxu0 %v2389
      %v2588 = vpop.f32.mrb[0].mxu0
      %v2589 = vadd.f32 %v2484, %v2588
      %v2590 = vpop.f32.mrb[0].mxu0
      %2591 = vmatprep.mubr.f32.mxu0 0.0
      %2592 = vmatmul.mubr.f32.gmra.mrb[0].mxu0 %v2391
      %v2593 = vpop.f32.mrb[0].mxu0
      %v2594 = vadd.f32 %v2489, %v2593
      %v2595 = vpop.f32.mrb[0].mxu0
      %2596 = vmatprep.mubr.f32.mxu0 0.0
      %2597 = vmatmul.mubr.f32.gmra.mrb[0].mxu0 %v2393
      %v2598 = vpop.f32.mrb[0].mxu0
      %v2599 = vadd.f32 %v2494, %v2598
      %v2600 = vpop.f32.mrb[0].mxu0
      %2601 = vmatprep.mubr.f32.mxu0 0.0
      %2602 = vmatmul.mubr.f32.gmra.mrb[0].mxu0 %v2395
      %v2603 = vpop.f32.mrb[0].mxu0
      %v2604 = vadd.f32 %v2499, %v2603
      %v2605 = vpop.f32.mrb[0].mxu0
      %2606 = vdwg.mxu0
      %v2607 = vmax.f32 %v2569, 0.0
      %v2608 = vmax.f32 %v2574, 0.0
      %v2609 = vmax.f32 %v2579, 0.0
      %v2610 = vmax.f32 %v2584, 0.0
      %v2611 = vmax.f32 %v2589, 0.0
      %v2612 = vmax.f32 %v2594, 0.0
      %v2613 = vmax.f32 %v2599, 0.0
      %v2614 = vmax.f32 %v2604, 0.0
      %2615 = vst.msk [vmem:[%s352] sm:$0xff] %vm632, %v2607
      %2616 = vst.msk [vmem:[%s352 + $0x8] sm:$0xff] %vm632, %v2608
      %2617 = vst.msk [vmem:[%s352 + $0x10] sm:$0xff] %vm632, %v2609
      %2618 = vst.msk [vmem:[%s352 + $0x18] sm:$0xff] %vm632, %v2610
      %2619 = vst.msk [vmem:[%s352 + $0x20] sm:$0xff] %vm632, %v2611
      %2620 = vst.msk [vmem:[%s352 + $0x28] sm:$0xff] %vm632, %v2612
      %2621 = vst.msk [vmem:[%s352 + $0x30] sm:$0xff] %vm632, %v2613
      %2622 = vst.msk [vmem:[%s352 + $0x38] sm:$0xff] %vm632, %v2614
      %p2623 = scmp.lt.s32.totalorder %s20, 1
      %s2624 = scalar_select %p2623, %s20, 1
      %s2625 = smul.addr %s2624, 8
      %s2626 = smul.addr %s2625, 8
      %s2627 = scalar_lea.vmem %s9, %s2626
      // Predicated region
      $region57: #{unet_up_forward.1} parent=55 // pred_check
        %p2628 = pneg %p237
      $region58: #{unet_up_forward.1} parent=55 // pred_check_branch
        %2630 = sbr.rel (%p2628) target = $region60
      $region59: #{unet_up_forward.1} parent=55 // pred_region
        _
      $region60: #{unet_up_forward.1} parent=55 // pred_fallthru
        _
    $region56: #{unet_up_forward.1} parent=5 // pred_fallthru
      _
    %p2631 = scmp.le.s32.totalorder 2, %s15
    // Predicated region
    $region61: #{unet_up_forward.1} parent=5 // pred_check
      %p2632 = pneg %p2631
    $region62: #{unet_up_forward.1} parent=5 // pred_check_branch
      %2634 = sbr.rel (%p2632) target = $region64
    $region63: #{unet_up_forward.1} parent=5 // pred_region
      %s2635 = ssub.s32 %s15, 2
      // Predicated region
      $region65: #{unet_up_forward.1} parent=63 // pred_check
        %p2636 = pneg %p243
      $region66: #{unet_up_forward.1} parent=63 // pred_check_branch
        %2638 = sbr.rel (%p2636) target = $region68
      $region67: #{unet_up_forward.1} parent=63 // pred_region
        %p2639 = scmp.lt.s32.totalorder %s21, 1
        %s2640 = scalar_select %p2639, %s21, 1
        %s2641 = smul.addr %s2640, 8
        %s2642 = smul.addr %s2641, 8
        %s2643 = scalar_lea.vmem %s9, %s2642
      $region68: #{unet_up_forward.1} parent=63 // pred_fallthru
        _
    $region64: #{unet_up_forward.1} parent=5 // pred_fallthru
      _
  $region6: #{unet_up_forward.1} parent=0 // loop_footer
    %s19 = sadd.s32 1, %s15
  $region7: #{unet_up_forward.1} parent=0 // loop_footer_branch
    %14 = sbr.rel target = $region3
  $region8: #{unet_up_forward.1} parent=0 // loop_exit
    _

</llo_original>
